<compile_context>
chip_gen: v6e
topology: v6e:2x2x1
jax: 0.10.0
libtpu: 0.0.40
codegen_flags: <defaults>
</compile_context>

<pallas_src>
import functools

import jax
import jax.numpy as jnp
import numpy as np
from jax.experimental import pallas as pl
from jax.experimental.pallas import tpu as pltpu

# ----------------------- model sizes (small, consistent with the module) ----
VOCAB = 50           # voc.num_words
HIDDEN = 32          # hidden_size
OUTPUT = 64          # output_size
OUT_PAD = 128        # lane-dense padded output width
BATCH = 8            # multiple of 8 sublanes
SEQ_LEN = 8          # encoder max length
N_LAYERS = 1
NUM_STEPS = 8        # decode steps folded into one kernel launch
NEG_BIG = -1e30

# 128-lane-aligned segment offsets inside the packed weight / bias slabs.
SEG_GI = 0           # w_i  : (H, 3H) GRU input->gates  (r,z,n), zero-padded to 128 lanes
SEG_GH = 128         # w_h  : (H, 3H) GRU hidden->gates (r,z,n), zero-padded to 128 lanes
SEG_AT = 256         # [ w_attn^T | w_cat_h | 0 ] : both multiply h_new -> one matmul
SEG_CC = 384         # [ w_cat_c | 0 ]            : multiplies context
SEG_OUT = 512        # w_out : (H, OUTPUT) zero-padded to 128 lanes (bias -1e30 on pad cols)
SLAB_W = 640


# ----------------------------- Pallas kernel --------------------------------
def _decoder_kernel(tok_ref,                     # SMEM (T, B) int32 token ids (prefetched)
                    h0_ref, enc_ref, emb_ref,    # VMEM-resident inputs (constant index maps)
                    w_ref, b_ref,                # packed weight / bias slabs
                    probs_ref, hfinal_ref,       # outputs
                    x_sc, h_sc):                 # VMEM scratch: gathered embedding, hidden
  f32 = jnp.float32
  H = HIDDEN
  t = pl.program_id(0)
  dot = functools.partial(jnp.dot, preferred_element_type=f32)

  @pl.when(t == 0)
  def _():
    h_sc[...] = h0_ref[...].astype(f32)

  # ---- embedding lookup: gather B rows from the VMEM-resident table ----
  # TODO(synk): embedding_dropout is identity (inference/eval semantics).
  for bb in range(BATCH):
    x_sc[pl.ds(bb, 1), :] = emb_ref[pl.ds(tok_ref[t, bb], 1), :]
  x = x_sc[...].astype(f32)                   # (B, H)
  h = h_sc[...]                               # (B, H)  previous GRU hidden (VMEM-carried)
  enc = enc_ref[...].astype(f32)              # (B, L, H) encoder outputs (batch-major)

  # ---- GRU cell: 2 lane-dense matmuls, full-vreg sigmoid, gate order (r, z, n) ----
  gi = dot(x, w_ref[:, SEG_GI:SEG_GI + 128]) + b_ref[:, SEG_GI:SEG_GI + 128]   # (B, 128)
  gh = dot(h, w_ref[:, SEG_GH:SEG_GH + 128]) + b_ref[:, SEG_GH:SEG_GH + 128]   # (B, 128)
  s = jax.nn.sigmoid(gi + gh)                                                  # one full-vreg EUP pass
  r = s[:, 0:H]
  z = s[:, H:2 * H]
  n = jnp.tanh(gi[:, 2 * H:3 * H] + r * gh[:, 2 * H:3 * H])
  h_new = (1.0 - z) * n + z * h                                                # (B, H)

  # ---- attention 'general', algebraically rearranged (no per-(b,l) matmul) ----
  # score[b,l] = <enc[b,l], h_new[b] @ W_attn^T> + <b_attn, h_new[b]>
  hw = dot(h_new, w_ref[:, SEG_AT:SEG_AT + 128])        # (B, 128): [v | h_new@w_cat_h | 0]
  v = hw[:, 0:H]
  cat_h = hw[:, H:2 * H]
  b_attn = b_ref[:, SEG_AT:SEG_AT + H]                  # (1, H)
  bias = jnp.sum(h_new * b_attn, axis=1, keepdims=True)             # (B, 1)
  scores = jnp.sum(enc * v[:, None, :], axis=2) + bias              # (B, L)
  scores = scores - jnp.max(scores, axis=1, keepdims=True)
  es = jnp.exp(scores)
  attn_w = es * pl.reciprocal(jnp.sum(es, axis=1, keepdims=True))   # softmax over L

  # ---- context = attn_weights.bmm(encoder_outputs.transpose(0,1)) ----
  context = jnp.sum(attn_w[:, :, None] * enc, axis=1)               # (B, H)

  # ---- concat Linear(2H -> H): two dots into one sum (no lane-axis concat) ----
  cw = dot(context, w_ref[:, SEG_CC:SEG_CC + 128])                  # (B, 128), cols 0:H used
  b_cat = b_ref[:, SEG_AT + H:SEG_AT + 2 * H]                       # (1, H)
  concat_out = jnp.tanh(cat_h + cw[:, 0:H] + b_cat)                 # (B, H)

  # ---- output projection (lane-padded to 128) + softmax over vocab ----
  logits = dot(concat_out, w_ref[:, SEG_OUT:SEG_OUT + 128]) + b_ref[:, SEG_OUT:SEG_OUT + 128]
  logits = logits - jnp.max(logits, axis=1, keepdims=True)
  el = jnp.exp(logits)                                              # padded cols -> exactly 0
  probs = el * pl.reciprocal(jnp.sum(el, axis=1, keepdims=True))

  probs_ref[...] = probs.astype(probs_ref.dtype)                    # lane-dense (B, 128) store
  h_sc[...] = h_new                                                 # carry hidden in VMEM only

  @pl.when(t == pl.num_programs(0) - 1)
  def _():
    hfinal_ref[...] = h_new.astype(hfinal_ref.dtype)                # single HBM writeback


# --------------------- one-time (pre-loop) parameter packing ----------------
def pack_params(p):
  H = HIDDEN
  w = jnp.zeros((H, SLAB_W), jnp.float32)
  w = w.at[:, SEG_GI:SEG_GI + 3 * H].set(
      jnp.concatenate([p['w_ir'], p['w_iz'], p['w_in']], axis=1))
  w = w.at[:, SEG_GH:SEG_GH + 3 * H].set(
      jnp.concatenate([p['w_hr'], p['w_hz'], p['w_hn']], axis=1))
  w = w.at[:, SEG_AT:SEG_AT + H].set(p['w_attn'].T)
  w = w.at[:, SEG_AT + H:SEG_AT + 2 * H].set(p['w_cat'][:H])
  w = w.at[:, SEG_CC:SEG_CC + H].set(p['w_cat'][H:])
  w = w.at[:, SEG_OUT:SEG_OUT + OUTPUT].set(p['w_out'])

  b = jnp.zeros((1, SLAB_W), jnp.float32)
  b = b.at[:, SEG_GI:SEG_GI + 3 * H].set(
      jnp.concatenate([p['b_ir'], p['b_iz'], p['b_in']], axis=1))
  b = b.at[:, SEG_GH:SEG_GH + 3 * H].set(
      jnp.concatenate([p['b_hr'], p['b_hz'], p['b_hn']], axis=1))
  b = b.at[:, SEG_AT:SEG_AT + H].set(p['b_attn'])
  b = b.at[:, SEG_AT + H:SEG_AT + 2 * H].set(p['b_cat'])
  b = b.at[:, SEG_OUT:SEG_OUT + 128].set(jnp.full((1, 128), NEG_BIG, jnp.float32))
  b = b.at[:, SEG_OUT:SEG_OUT + OUTPUT].set(p['b_out'])
  return {'emb': p['embedding'], 'w_slab': w, 'b_slab': b}


# ------------------------------ fused decode ---------------------------------
def decode(token_ids, last_hidden, enc_b, packed):
  """Run T decoder forward() steps (teacher-forced token ids) in one fused kernel.

  token_ids: (T, B) int32; last_hidden: (1, B, H); enc_b: (B, L, H) batch-major encoder outs.
  returns: probs (T, B, OUTPUT) softmax rows per step, hidden (1, B, H) final GRU hidden.
  """
  T, B = token_ids.shape
  vmem_const = lambda shape: pl.BlockSpec(shape, lambda t, tok, _s=shape: (0,) * len(_s))

  grid_spec = pltpu.PrefetchScalarGridSpec(
      num_scalar_prefetch=1,
      grid=(T,),
      in_specs=[
          vmem_const((B, HIDDEN)),                  # h0
          vmem_const((B, SEQ_LEN, HIDDEN)),         # encoder outputs (batch-major)
          vmem_const((VOCAB, HIDDEN)),              # embedding table
          vmem_const((HIDDEN, SLAB_W)),             # packed weight slab
          vmem_const((1, SLAB_W)),                  # packed bias slab
      ],
      out_specs=(
          pl.BlockSpec((None, B, OUT_PAD), lambda t, tok: (t, 0, 0)),   # per-step probs
          pl.BlockSpec((B, HIDDEN), lambda t, tok: (0, 0)),             # final hidden
      ),
      scratch_shapes=[
          pltpu.VMEM((B, HIDDEN), jnp.float32),     # gathered embedding
          pltpu.VMEM((B, HIDDEN), jnp.float32),     # carried GRU hidden
      ],
  )
  probs_pad, h_final = pl.pallas_call(
      _decoder_kernel,
      out_shape=(
          jax.ShapeDtypeStruct((T, B, OUT_PAD), jnp.float32),
          jax.ShapeDtypeStruct((B, HIDDEN), jnp.float32),
      ),
      grid_spec=grid_spec,
      compiler_params=pltpu.CompilerParams(dimension_semantics=("arbitrary",)),
  )(token_ids, last_hidden[0], enc_b, packed['emb'], packed['w_slab'], packed['b_slab'])
  # OUTPUT slice hoisted out of the step loop: one slice for the whole decode.
  return probs_pad[:, :, :OUTPUT], h_final[None]


decode_jit = jax.jit(decode)


# ------------------------- pure-JAX reference (for checking) ----------------
def reference_forward(input_step, last_hidden, encoder_outputs, params):
  x = params['embedding'][input_step[0]]
  h = last_hidden[0]
  r = jax.nn.sigmoid(x @ params['w_ir'] + params['b_ir'] + h @ params['w_hr'] + params['b_hr'])
  z = jax.nn.sigmoid(x @ params['w_iz'] + params['b_iz'] + h @ params['w_hz'] + params['b_hz'])
  n = jnp.tanh(x @ params['w_in'] + params['b_in'] + r * (h @ params['w_hn'] + params['b_hn']))
  h_new = (1.0 - z) * n + z * h                                   # (B, H)
  energy = encoder_outputs @ params['w_attn'] + params['b_attn']  # (L, B, H)
  scores = jnp.sum(energy * h_new[None], axis=2)                  # (L, B)
  attn_w = jax.nn.softmax(scores.T, axis=1)                       # (B, L)
  context = jnp.einsum('bl,lbh->bh', attn_w, encoder_outputs)
  concat_out = jnp.tanh(jnp.concatenate([h_new, context], 1) @ params['w_cat'] + params['b_cat'])
  out = jax.nn.softmax(concat_out @ params['w_out'] + params['b_out'], axis=1)
  return out, h_new[None]


def reference_decode(token_ids, last_hidden, encoder_outputs, params):
  outs, hidden = [], last_hidden
  for t in range(token_ids.shape[0]):
    out, hidden = reference_forward(token_ids[t:t + 1], hidden, encoder_outputs, params)
    outs.append(out)
  return jnp.stack(outs, axis=0), hidden


# --------------------------------- main --------------------------------------
def make_params(key):
  def init(k, shape, scale=0.1):
    return scale * jax.random.normal(k, shape, dtype=jnp.float32)
  keys = jax.random.split(key, 20)
  H, O = HIDDEN, OUTPUT
  return {
      'embedding': init(keys[0], (VOCAB, H)),
      'w_ir': init(keys[1], (H, H)), 'w_iz': init(keys[2], (H, H)), 'w_in': init(keys[3], (H, H)),
      'w_hr': init(keys[4], (H, H)), 'w_hz': init(keys[5], (H, H)), 'w_hn': init(keys[6], (H, H)),
      'b_ir': init(keys[7], (1, H)), 'b_iz': init(keys[8], (1, H)), 'b_in': init(keys[9], (1, H)),
      'b_hr': init(keys[10], (1, H)), 'b_hz': init(keys[11], (1, H)), 'b_hn': init(keys[12], (1, H)),
      'w_attn': init(keys[13], (H, H)), 'b_attn': init(keys[14], (1, H)),
      'w_cat': init(keys[15], (2 * H, H)), 'b_cat': init(keys[16], (1, H)),
      'w_out': init(keys[17], (H, O)), 'b_out': init(keys[18], (1, O)),
  }


if __name__ == "__main__":
  key = jax.random.PRNGKey(0)
  kp, k1, k2, k3 = jax.random.split(key, 4)
  params = make_params(kp)

  token_ids = jax.random.randint(k1, (NUM_STEPS, BATCH), 0, VOCAB, dtype=jnp.int32)
  last_hidden = 0.1 * jax.random.normal(k2, (N_LAYERS, BATCH, HIDDEN), jnp.float32)
  encoder_outputs = 0.1 * jax.random.normal(k3, (SEQ_LEN, BATCH, HIDDEN), jnp.float32)

  # One-time prep (outside the decode loop): pack/fuse weights, batch-major encoder outputs.
  packed = pack_params(params)
  enc_b = jnp.transpose(encoder_outputs, (1, 0, 2))                 # (B, L, H)

  probs, hidden = decode_jit(token_ids, last_hidden, enc_b, packed)
  probs, hidden = jax.block_until_ready((probs, hidden))

  ref_probs, ref_hidden = reference_decode(token_ids, last_hidden, encoder_outputs, params)
  np.testing.assert_allclose(np.asarray(probs), np.asarray(ref_probs), rtol=1e-5, atol=1e-5)
  np.testing.assert_allclose(np.asarray(hidden), np.asarray(ref_hidden), rtol=1e-5, atol=1e-5)
  assert probs.shape == (NUM_STEPS, BATCH, OUTPUT)
  assert hidden.shape == (N_LAYERS, BATCH, HIDDEN)
  np.testing.assert_allclose(np.asarray(probs).sum(axis=2),
                             np.ones((NUM_STEPS, BATCH)), rtol=1e-5)

  print("KERNEL_OK")
</pallas_src>

<mosaic_0001>
module attributes {stable_mosaic.version = 11 : i64} {
  func.func @_decoder_kernel(%arg0: i32, %arg1: memref<8x8xi32, #tpu.memory_space<smem>>, %arg2: memref<8x32xf32, #tpu.memory_space<vmem>>, %arg3: memref<8x8x32xf32, #tpu.memory_space<vmem>>, %arg4: memref<50x32xf32, #tpu.memory_space<vmem>>, %arg5: memref<32x640xf32, #tpu.memory_space<vmem>>, %arg6: memref<1x640xf32, #tpu.memory_space<vmem>>, %arg7: memref<1x8x128xf32, #tpu.memory_space<vmem>>, %arg8: memref<8x32xf32, #tpu.memory_space<vmem>>, %arg9: memref<8x32xf32, #tpu.memory_space<vmem>>, %arg10: memref<8x32xf32, #tpu.memory_space<vmem>>) attributes {dimension_semantics = [#tpu.dimension_semantics<arbitrary>], iteration_bounds = array<i64: 8>, scalar_prefetch = 1 : i64, scratch_operands = 2 : i64, tpu.core_type = #tpu.core_type<tc>, window_params = [{pipeline_mode = #tpu.pipeline_mode<synchronous>, transform_indices = @transform_0, window_bounds = array<i64: 8, 32>}, {pipeline_mode = #tpu.pipeline_mode<synchronous>, transform_indices = @transform_1, window_bounds = array<i64: 8, 8, 32>}, {pipeline_mode = #tpu.pipeline_mode<synchronous>, transform_indices = @transform_2, window_bounds = array<i64: 50, 32>}, {pipeline_mode = #tpu.pipeline_mode<synchronous>, transform_indices = @transform_3, window_bounds = array<i64: 32, 640>}, {pipeline_mode = #tpu.pipeline_mode<synchronous>, transform_indices = @transform_4, window_bounds = array<i64: 1, 640>}, {transform_indices = @transform_5, window_bounds = array<i64: 1, 8, 128>}, {pipeline_mode = #tpu.pipeline_mode<synchronous>, transform_indices = @transform_6, window_bounds = array<i64: 8, 32>}]} {
    %c0_i32 = arith.constant 0 : i32
    %0 = arith.cmpi eq, %arg0, %c0_i32 : i32
    %1 = arith.extui %0 : i1 to i32
    %c0_i32_0 = arith.constant 0 : i32
    %2 = arith.cmpi ne, %1, %c0_i32_0 : i32
    scf.if %2 {
      %c0_66 = arith.constant 0 : index
      %c0_67 = arith.constant 0 : index
      %133 = vector.load %arg2[%c0_66, %c0_67] : memref<8x32xf32, #tpu.memory_space<vmem>>, vector<8x32xf32>
      %c0_68 = arith.constant 0 : index
      %c0_69 = arith.constant 0 : index
      %134 = vector.load %arg10[%c0_68, %c0_69] : memref<8x32xf32, #tpu.memory_space<vmem>>, vector<8x32xf32>
      tpu.vector_store %arg10[%c0_68, %c0_69], %133 {strides = array<i32>} : memref<8x32xf32, #tpu.memory_space<vmem>>, vector<8x32xf32>,
    } else {
    }
    %3 = arith.index_cast %arg0 : i32 to index
    %c0 = arith.constant 0 : index
    %4 = memref.load %arg1[%3, %c0] : memref<8x8xi32, #tpu.memory_space<smem>>
    %5 = arith.index_cast %4 : i32 to index
    %c0_1 = arith.constant 0 : index
    %6 = vector.load %arg4[%5, %c0_1] : memref<50x32xf32, #tpu.memory_space<vmem>>, vector<1x32xf32>
    %c0_2 = arith.constant 0 : index
    %c0_3 = arith.constant 0 : index
    %7 = vector.load %arg9[%c0_2, %c0_3] : memref<8x32xf32, #tpu.memory_space<vmem>>, vector<1x32xf32>
    tpu.vector_store %arg9[%c0_2, %c0_3], %6 {strides = array<i32>} : memref<8x32xf32, #tpu.memory_space<vmem>>, vector<1x32xf32>,
    %8 = arith.index_cast %arg0 : i32 to index
    %c1 = arith.constant 1 : index
    %9 = memref.load %arg1[%8, %c1] : memref<8x8xi32, #tpu.memory_space<smem>>
    %10 = arith.index_cast %9 : i32 to index
    %c0_4 = arith.constant 0 : index
    %11 = vector.load %arg4[%10, %c0_4] : memref<50x32xf32, #tpu.memory_space<vmem>>, vector<1x32xf32>
    %c1_5 = arith.constant 1 : index
    %c0_6 = arith.constant 0 : index
    %12 = vector.load %arg9[%c1_5, %c0_6] : memref<8x32xf32, #tpu.memory_space<vmem>>, vector<1x32xf32>
    tpu.vector_store %arg9[%c1_5, %c0_6], %11 {strides = array<i32>} : memref<8x32xf32, #tpu.memory_space<vmem>>, vector<1x32xf32>,
    %13 = arith.index_cast %arg0 : i32 to index
    %c2 = arith.constant 2 : index
    %14 = memref.load %arg1[%13, %c2] : memref<8x8xi32, #tpu.memory_space<smem>>
    %15 = arith.index_cast %14 : i32 to index
    %c0_7 = arith.constant 0 : index
    %16 = vector.load %arg4[%15, %c0_7] : memref<50x32xf32, #tpu.memory_space<vmem>>, vector<1x32xf32>
    %c2_8 = arith.constant 2 : index
    %c0_9 = arith.constant 0 : index
    %17 = vector.load %arg9[%c2_8, %c0_9] : memref<8x32xf32, #tpu.memory_space<vmem>>, vector<1x32xf32>
    tpu.vector_store %arg9[%c2_8, %c0_9], %16 {strides = array<i32>} : memref<8x32xf32, #tpu.memory_space<vmem>>, vector<1x32xf32>,
    %18 = arith.index_cast %arg0 : i32 to index
    %c3 = arith.constant 3 : index
    %19 = memref.load %arg1[%18, %c3] : memref<8x8xi32, #tpu.memory_space<smem>>
    %20 = arith.index_cast %19 : i32 to index
    %c0_10 = arith.constant 0 : index
    %21 = vector.load %arg4[%20, %c0_10] : memref<50x32xf32, #tpu.memory_space<vmem>>, vector<1x32xf32>
    %c3_11 = arith.constant 3 : index
    %c0_12 = arith.constant 0 : index
    %22 = vector.load %arg9[%c3_11, %c0_12] : memref<8x32xf32, #tpu.memory_space<vmem>>, vector<1x32xf32>
    tpu.vector_store %arg9[%c3_11, %c0_12], %21 {strides = array<i32>} : memref<8x32xf32, #tpu.memory_space<vmem>>, vector<1x32xf32>,
    %23 = arith.index_cast %arg0 : i32 to index
    %c4 = arith.constant 4 : index
    %24 = memref.load %arg1[%23, %c4] : memref<8x8xi32, #tpu.memory_space<smem>>
    %25 = arith.index_cast %24 : i32 to index
    %c0_13 = arith.constant 0 : index
    %26 = vector.load %arg4[%25, %c0_13] : memref<50x32xf32, #tpu.memory_space<vmem>>, vector<1x32xf32>
    %c4_14 = arith.constant 4 : index
    %c0_15 = arith.constant 0 : index
    %27 = vector.load %arg9[%c4_14, %c0_15] : memref<8x32xf32, #tpu.memory_space<vmem>>, vector<1x32xf32>
    tpu.vector_store %arg9[%c4_14, %c0_15], %26 {strides = array<i32>} : memref<8x32xf32, #tpu.memory_space<vmem>>, vector<1x32xf32>,
    %28 = arith.index_cast %arg0 : i32 to index
    %c5 = arith.constant 5 : index
    %29 = memref.load %arg1[%28, %c5] : memref<8x8xi32, #tpu.memory_space<smem>>
    %30 = arith.index_cast %29 : i32 to index
    %c0_16 = arith.constant 0 : index
    %31 = vector.load %arg4[%30, %c0_16] : memref<50x32xf32, #tpu.memory_space<vmem>>, vector<1x32xf32>
    %c5_17 = arith.constant 5 : index
    %c0_18 = arith.constant 0 : index
    %32 = vector.load %arg9[%c5_17, %c0_18] : memref<8x32xf32, #tpu.memory_space<vmem>>, vector<1x32xf32>
    tpu.vector_store %arg9[%c5_17, %c0_18], %31 {strides = array<i32>} : memref<8x32xf32, #tpu.memory_space<vmem>>, vector<1x32xf32>,
    %33 = arith.index_cast %arg0 : i32 to index
    %c6 = arith.constant 6 : index
    %34 = memref.load %arg1[%33, %c6] : memref<8x8xi32, #tpu.memory_space<smem>>
    %35 = arith.index_cast %34 : i32 to index
    %c0_19 = arith.constant 0 : index
    %36 = vector.load %arg4[%35, %c0_19] : memref<50x32xf32, #tpu.memory_space<vmem>>, vector<1x32xf32>
    %c6_20 = arith.constant 6 : index
    %c0_21 = arith.constant 0 : index
    %37 = vector.load %arg9[%c6_20, %c0_21] : memref<8x32xf32, #tpu.memory_space<vmem>>, vector<1x32xf32>
    tpu.vector_store %arg9[%c6_20, %c0_21], %36 {strides = array<i32>} : memref<8x32xf32, #tpu.memory_space<vmem>>, vector<1x32xf32>,
    %38 = arith.index_cast %arg0 : i32 to index
    %c7 = arith.constant 7 : index
    %39 = memref.load %arg1[%38, %c7] : memref<8x8xi32, #tpu.memory_space<smem>>
    %40 = arith.index_cast %39 : i32 to index
    %c0_22 = arith.constant 0 : index
    %41 = vector.load %arg4[%40, %c0_22] : memref<50x32xf32, #tpu.memory_space<vmem>>, vector<1x32xf32>
    %c7_23 = arith.constant 7 : index
    %c0_24 = arith.constant 0 : index
    %42 = vector.load %arg9[%c7_23, %c0_24] : memref<8x32xf32, #tpu.memory_space<vmem>>, vector<1x32xf32>
    tpu.vector_store %arg9[%c7_23, %c0_24], %41 {strides = array<i32>} : memref<8x32xf32, #tpu.memory_space<vmem>>, vector<1x32xf32>,
    %c0_25 = arith.constant 0 : index
    %c0_26 = arith.constant 0 : index
    %43 = vector.load %arg9[%c0_25, %c0_26] : memref<8x32xf32, #tpu.memory_space<vmem>>, vector<8x32xf32>
    %c0_27 = arith.constant 0 : index
    %c0_28 = arith.constant 0 : index
    %44 = vector.load %arg10[%c0_27, %c0_28] : memref<8x32xf32, #tpu.memory_space<vmem>>, vector<8x32xf32>
    %c0_29 = arith.constant 0 : index
    %c0_30 = arith.constant 0 : index
    %c0_31 = arith.constant 0 : index
    %45 = vector.load %arg3[%c0_29, %c0_30, %c0_31] : memref<8x8x32xf32, #tpu.memory_space<vmem>>, vector<8x8x32xf32>
    %c0_32 = arith.constant 0 : index
    %c0_33 = arith.constant 0 : index
    %46 = vector.load %arg5[%c0_32, %c0_33] : memref<32x640xf32, #tpu.memory_space<vmem>>, vector<32x128xf32>
    %cst = arith.constant dense<0.000000e+00> : vector<8x128xf32>
    %47 = tpu.matmul %43, %46, %cst {dimension_numbers = #tpu.dot_dimension_numbers<[1], [0], [0], [1], [0, 0, 1, 1], [], []>} : vector<8x32xf32>, vector<32x128xf32>, vector<8x128xf32> -> vector<8x128xf32>
    %c0_34 = arith.constant 0 : index
    %c0_35 = arith.constant 0 : index
    %48 = vector.load %arg6[%c0_34, %c0_35] : memref<1x640xf32, #tpu.memory_space<vmem>>, vector<1x128xf32>
    %49 = vector.broadcast %48 : vector<1x128xf32> to vector<8x128xf32>
    %50 = arith.addf %47, %49 : vector<8x128xf32>
    %c0_36 = arith.constant 0 : index
    %c128 = arith.constant 128 : index
    %51 = vector.load %arg5[%c0_36, %c128] : memref<32x640xf32, #tpu.memory_space<vmem>>, vector<32x128xf32>
    %cst_37 = arith.constant dense<0.000000e+00> : vector<8x128xf32>
    %52 = tpu.matmul %44, %51, %cst_37 {dimension_numbers = #tpu.dot_dimension_numbers<[1], [0], [0], [1], [0, 0, 1, 1], [], []>} : vector<8x32xf32>, vector<32x128xf32>, vector<8x128xf32> -> vector<8x128xf32>
    %c0_38 = arith.constant 0 : index
    %c128_39 = arith.constant 128 : index
    %53 = vector.load %arg6[%c0_38, %c128_39] : memref<1x640xf32, #tpu.memory_space<vmem>>, vector<1x128xf32>
    %54 = vector.broadcast %53 : vector<1x128xf32> to vector<8x128xf32>
    %55 = arith.addf %52, %54 : vector<8x128xf32>
    %56 = arith.addf %50, %55 : vector<8x128xf32>
    %57 = arith.negf %56 : vector<8x128xf32>
    %58 = math.exp %57 : vector<8x128xf32>
    %cst_40 = arith.constant 1.000000e+00 : f32
    %59 = vector.broadcast %cst_40 : f32 to vector<8x128xf32>
    %60 = arith.addf %59, %58 : vector<8x128xf32>
    %61 = arith.divf %59, %60 : vector<8x128xf32>
    %62 = vector.extract_strided_slice %61 {offsets = [0, 0], sizes = [8, 32], strides = [1, 1]} : vector<8x128xf32> to vector<8x32xf32>
    %63 = vector.extract_strided_slice %61 {offsets = [0, 32], sizes = [8, 32], strides = [1, 1]} : vector<8x128xf32> to vector<8x32xf32>
    %64 = vector.extract_strided_slice %50 {offsets = [0, 64], sizes = [8, 32], strides = [1, 1]} : vector<8x128xf32> to vector<8x32xf32>
    %65 = vector.extract_strided_slice %55 {offsets = [0, 64], sizes = [8, 32], strides = [1, 1]} : vector<8x128xf32> to vector<8x32xf32>
    %66 = arith.mulf %62, %65 : vector<8x32xf32>
    %67 = arith.addf %64, %66 : vector<8x32xf32>
    %68 = math.tanh %67 : vector<8x32xf32>
    %cst_41 = arith.constant 1.000000e+00 : f32
    %69 = vector.broadcast %cst_41 : f32 to vector<8x32xf32>
    %70 = arith.subf %69, %63 : vector<8x32xf32>
    %71 = arith.mulf %70, %68 : vector<8x32xf32>
    %72 = arith.mulf %63, %44 : vector<8x32xf32>
    %73 = arith.addf %71, %72 : vector<8x32xf32>
    %c0_42 = arith.constant 0 : index
    %c256 = arith.constant 256 : index
    %74 = vector.load %arg5[%c0_42, %c256] : memref<32x640xf32, #tpu.memory_space<vmem>>, vector<32x128xf32>
    %cst_43 = arith.constant dense<0.000000e+00> : vector<8x128xf32>
    %75 = tpu.matmul %73, %74, %cst_43 {dimension_numbers = #tpu.dot_dimension_numbers<[1], [0], [0], [1], [0, 0, 1, 1], [], []>} : vector<8x32xf32>, vector<32x128xf32>, vector<8x128xf32> -> vector<8x128xf32>
    %76 = vector.extract_strided_slice %75 {offsets = [0, 0], sizes = [8, 32], strides = [1, 1]} : vector<8x128xf32> to vector<8x32xf32>
    %77 = vector.extract_strided_slice %75 {offsets = [0, 32], sizes = [8, 32], strides = [1, 1]} : vector<8x128xf32> to vector<8x32xf32>
    %c0_44 = arith.constant 0 : index
    %c256_45 = arith.constant 256 : index
    %78 = vector.load %arg6[%c0_44, %c256_45] : memref<1x640xf32, #tpu.memory_space<vmem>>, vector<1x32xf32>
    %79 = vector.broadcast %78 : vector<1x32xf32> to vector<8x32xf32>
    %80 = arith.mulf %73, %79 : vector<8x32xf32>
    %cst_46 = arith.constant dense<0.000000e+00> : vector<8xf32>
    %81 = vector.multi_reduction <add>, %80, %cst_46 [1] : vector<8x32xf32> to vector<8xf32>
    %82 = vector.shape_cast %81 : vector<8xf32> to vector<8x1xf32>
    %83 = vector.shape_cast %76 : vector<8x32xf32> to vector<8x1x32xf32>
    %84 = vector.broadcast %83 : vector<8x1x32xf32> to vector<8x8x32xf32>
    %85 = arith.mulf %45, %84 : vector<8x8x32xf32>
    %cst_47 = arith.constant dense<0.000000e+00> : vector<8x8xf32>
    %86 = vector.multi_reduction <add>, %85, %cst_47 [2] : vector<8x8x32xf32> to vector<8x8xf32>
    %87 = vector.broadcast %82 : vector<8x1xf32> to vector<8x8xf32>
    %88 = arith.addf %86, %87 : vector<8x8xf32>
    %cst_48 = arith.constant dense<0xFF800000> : vector<8xf32>
    %89 = vector.multi_reduction <maximumf>, %88, %cst_48 [1] : vector<8x8xf32> to vector<8xf32>
    %90 = vector.shape_cast %89 : vector<8xf32> to vector<8x1xf32>
    %91 = vector.broadcast %90 : vector<8x1xf32> to vector<8x8xf32>
    %92 = arith.subf %88, %91 : vector<8x8xf32>
    %93 = math.exp %92 : vector<8x8xf32>
    %cst_49 = arith.constant dense<0.000000e+00> : vector<8xf32>
    %94 = vector.multi_reduction <add>, %93, %cst_49 [1] : vector<8x8xf32> to vector<8xf32>
    %95 = vector.shape_cast %94 : vector<8xf32> to vector<8x1xf32>
    %96 = tpu.reciprocal %95 : vector<8x1xf32> -> vector<8x1xf32>
    %97 = vector.broadcast %96 : vector<8x1xf32> to vector<8x8xf32>
    %98 = arith.mulf %93, %97 : vector<8x8xf32>
    %99 = vector.shape_cast %98 : vector<8x8xf32> to vector<8x8x1xf32>
    %100 = vector.broadcast %99 : vector<8x8x1xf32> to vector<8x8x32xf32>
    %101 = arith.mulf %100, %45 : vector<8x8x32xf32>
    %cst_50 = arith.constant dense<0.000000e+00> : vector<8x32xf32>
    %102 = vector.multi_reduction <add>, %101, %cst_50 [1] : vector<8x8x32xf32> to vector<8x32xf32>
    %c0_51 = arith.constant 0 : index
    %c384 = arith.constant 384 : index
    %103 = vector.load %arg5[%c0_51, %c384] : memref<32x640xf32, #tpu.memory_space<vmem>>, vector<32x128xf32>
    %cst_52 = arith.constant dense<0.000000e+00> : vector<8x128xf32>
    %104 = tpu.matmul %102, %103, %cst_52 {dimension_numbers = #tpu.dot_dimension_numbers<[1], [0], [0], [1], [0, 0, 1, 1], [], []>} : vector<8x32xf32>, vector<32x128xf32>, vector<8x128xf32> -> vector<8x128xf32>
    %c0_53 = arith.constant 0 : index
    %c288 = arith.constant 288 : index
    %105 = vector.load %arg6[%c0_53, %c288] : memref<1x640xf32, #tpu.memory_space<vmem>>, vector<1x32xf32>
    %106 = vector.extract_strided_slice %104 {offsets = [0, 0], sizes = [8, 32], strides = [1, 1]} : vector<8x128xf32> to vector<8x32xf32>
    %107 = arith.addf %77, %106 : vector<8x32xf32>
    %108 = vector.broadcast %105 : vector<1x32xf32> to vector<8x32xf32>
    %109 = arith.addf %107, %108 : vector<8x32xf32>
    %110 = math.tanh %109 : vector<8x32xf32>
    %c0_54 = arith.constant 0 : index
    %c512 = arith.constant 512 : index
    %111 = vector.load %arg5[%c0_54, %c512] : memref<32x640xf32, #tpu.memory_space<vmem>>, vector<32x128xf32>
    %cst_55 = arith.constant dense<0.000000e+00> : vector<8x128xf32>
    %112 = tpu.matmul %110, %111, %cst_55 {dimension_numbers = #tpu.dot_dimension_numbers<[1], [0], [0], [1], [0, 0, 1, 1], [], []>} : vector<8x32xf32>, vector<32x128xf32>, vector<8x128xf32> -> vector<8x128xf32>
    %c0_56 = arith.constant 0 : index
    %c512_57 = arith.constant 512 : index
    %113 = vector.load %arg6[%c0_56, %c512_57] : memref<1x640xf32, #tpu.memory_space<vmem>>, vector<1x128xf32>
    %114 = vector.broadcast %113 : vector<1x128xf32> to vector<8x128xf32>
    %115 = arith.addf %112, %114 : vector<8x128xf32>
    %cst_58 = arith.constant dense<0xFF800000> : vector<8xf32>
    %116 = vector.multi_reduction <maximumf>, %115, %cst_58 [1] : vector<8x128xf32> to vector<8xf32>
    %117 = vector.shape_cast %116 : vector<8xf32> to vector<8x1xf32>
    %118 = vector.broadcast %117 : vector<8x1xf32> to vector<8x128xf32>
    %119 = arith.subf %115, %118 : vector<8x128xf32>
    %120 = math.exp %119 : vector<8x128xf32>
    %cst_59 = arith.constant dense<0.000000e+00> : vector<8xf32>
    %121 = vector.multi_reduction <add>, %120, %cst_59 [1] : vector<8x128xf32> to vector<8xf32>
    %122 = vector.shape_cast %121 : vector<8xf32> to vector<8x1xf32>
    %123 = tpu.reciprocal %122 : vector<8x1xf32> -> vector<8x1xf32>
    %124 = vector.broadcast %123 : vector<8x1xf32> to vector<8x128xf32>
    %125 = arith.mulf %120, %124 : vector<8x128xf32>
    %c0_60 = arith.constant 0 : index
    %c0_61 = arith.constant 0 : index
    %c0_62 = arith.constant 0 : index
    %126 = vector.load %arg7[%c0_60, %c0_61, %c0_62] : memref<1x8x128xf32, #tpu.memory_space<vmem>>, vector<1x8x128xf32>
    %127 = vector.shape_cast %126 : vector<1x8x128xf32> to vector<8x128xf32>
    %128 = vector.shape_cast %125 : vector<8x128xf32> to vector<1x8x128xf32>
    tpu.vector_store %arg7[%c0_60, %c0_61, %c0_62], %128 {strides = array<i32>} : memref<1x8x128xf32, #tpu.memory_space<vmem>>, vector<1x8x128xf32>,
    %c0_63 = arith.constant 0 : index
    %c0_64 = arith.constant 0 : index
    %129 = vector.load %arg10[%c0_63, %c0_64] : memref<8x32xf32, #tpu.memory_space<vmem>>, vector<8x32xf32>
    tpu.vector_store %arg10[%c0_63, %c0_64], %73 {strides = array<i32>} : memref<8x32xf32, #tpu.memory_space<vmem>>, vector<8x32xf32>,
    %c7_i32 = arith.constant 7 : i32
    %130 = arith.cmpi eq, %arg0, %c7_i32 : i32
    %131 = arith.extui %130 : i1 to i32
    %c0_i32_65 = arith.constant 0 : i32
    %132 = arith.cmpi ne, %131, %c0_i32_65 : i32
    scf.if %132 {
      %c0_66 = arith.constant 0 : index
      %c0_67 = arith.constant 0 : index
      %133 = vector.load %arg8[%c0_66, %c0_67] : memref<8x32xf32, #tpu.memory_space<vmem>>, vector<8x32xf32>
      tpu.vector_store %arg8[%c0_66, %c0_67], %73 {strides = array<i32>} : memref<8x32xf32, #tpu.memory_space<vmem>>, vector<8x32xf32>,
    } else {
    }
    return
  }
  func.func @transform_0(%arg0: i32, %arg1: memref<8x8xi32, #tpu.memory_space<smem>>) -> (i32, i32) {
    %c0_i32 = arith.constant 0 : i32
    %c0_i32_0 = arith.constant 0 : i32
    %c0_i32_1 = arith.constant 0 : i32
    return %c0_i32, %c0_i32_0 : i32, i32
  }
  func.func @transform_1(%arg0: i32, %arg1: memref<8x8xi32, #tpu.memory_space<smem>>) -> (i32, i32, i32) {
    %c0_i32 = arith.constant 0 : i32
    %c0_i32_0 = arith.constant 0 : i32
    %c0_i32_1 = arith.constant 0 : i32
    %c0_i32_2 = arith.constant 0 : i32
    return %c0_i32, %c0_i32_0, %c0_i32_1 : i32, i32, i32
  }
  func.func @transform_2(%arg0: i32, %arg1: memref<8x8xi32, #tpu.memory_space<smem>>) -> (i32, i32) {
    %c0_i32 = arith.constant 0 : i32
    %c0_i32_0 = arith.constant 0 : i32
    %c0_i32_1 = arith.constant 0 : i32
    return %c0_i32, %c0_i32_0 : i32, i32
  }
  func.func @transform_3(%arg0: i32, %arg1: memref<8x8xi32, #tpu.memory_space<smem>>) -> (i32, i32) {
    %c0_i32 = arith.constant 0 : i32
    %c0_i32_0 = arith.constant 0 : i32
    %c0_i32_1 = arith.constant 0 : i32
    return %c0_i32, %c0_i32_0 : i32, i32
  }
  func.func @transform_4(%arg0: i32, %arg1: memref<8x8xi32, #tpu.memory_space<smem>>) -> (i32, i32) {
    %c0_i32 = arith.constant 0 : i32
    %c0_i32_0 = arith.constant 0 : i32
    %c0_i32_1 = arith.constant 0 : i32
    return %c0_i32, %c0_i32_0 : i32, i32
  }
  func.func @transform_5(%arg0: i32, %arg1: memref<8x8xi32, #tpu.memory_space<smem>>) -> (i32, i32, i32) {
    %c0_i32 = arith.constant 0 : i32
    %c0_i32_0 = arith.constant 0 : i32
    %c0_i32_1 = arith.constant 0 : i32
    return %arg0, %c0_i32, %c0_i32_0 : i32, i32, i32
  }
  func.func @transform_6(%arg0: i32, %arg1: memref<8x8xi32, #tpu.memory_space<smem>>) -> (i32, i32) {
    %c0_i32 = arith.constant 0 : i32
    %c0_i32_0 = arith.constant 0 : i32
    %c0_i32_1 = arith.constant 0 : i32
    return %c0_i32, %c0_i32_0 : i32, i32
  }
}

</mosaic_0001>

<llo_original>
// kernel: decode.1
$region0: #{decode.1}
  #allocation0 [shape = 'u32[]', space=smem, size = 0x4, offset = 0x4, fixed_abs, tag = 'smem constant byte address 0x4 - core index']
  #allocation1 [shape = 'u32[144,128]{1,0:T(1,128)}', space=vmem, size = 0x12000, scoped, tag = 'internal scratch']
  #allocation2 [shape = 'f32[8,32]{1,0:T(8,128)}', space=vmem, size = 0x1000, scoped, tag = 'scratch operand']
  #allocation3 [shape = 'f32[8,32]{1,0:T(8,128)}', space=vmem, size = 0x1000, scoped, tag = 'scratch operand']
  #allocation4 [shape = 's32[1]{0}', space=sflag, size = 0x4, scoped, tag = 'scoped memory for decode.1']
  #allocation5 [shape = 'u8[4096]{0}', space=smem, size = 0x1000, scoped, tag = 'prefetched SMEM operand 0']
  %s0 = inlined_call_operand.vmem [shape: s32[8,8], index: 0, kind: input, shape index: {}]
  %s1 = inlined_call_operand.vmem [shape: f32[8,32], index: 1, kind: input, shape index: {}]
  %s2 = inlined_call_operand.vmem [shape: f32[8,8,32], index: 2, kind: input, shape index: {}]
  %s3 = inlined_call_operand.vmem [shape: f32[50,32], index: 3, kind: input, shape index: {}]
  %s4 = inlined_call_operand.hbm [shape: f32[32,640], index: 4, kind: input, shape index: {}]
  %s5 = inlined_call_operand.vmem [shape: f32[1,640], index: 5, kind: input, shape index: {}]
  %s6 = inlined_call_operand.hbm [shape: f32[8,8,128], index: 6, kind: output, shape index: {0}]
  %s7 = inlined_call_operand.hbm [shape: f32[8,32], index: 7, kind: output, shape index: {1}]
  %8 = xla_tuple %s6, %s7
  %s9 = sld [smem:[#allocation0]]
  $region73: #{decode.1} parent=0
    _
  %s11 = ssub.s32 1, %s9
  %s12 = scalar_select 0, %s11, %s9
  %s13 = sshll.u32 %s0, 4
  %s14 = int_to_ptr.vmem [resolvable:$true] %s13
  %16 = dma.vmem_to_smem %s14, 128, [#allocation5], [#allocation4]
  %17 = dma.done [#allocation4], 128
  %18 = sfence
  $region1: #{decode.1} parent=0
    #allocation6 [shape = 'u8[81920]{0}', space=vmem, size = 0x14000, scoped, tag = 'input window, operand 4, single buffered']
    #allocation7 [shape = 's32[2]{0}', space=sflag, size = 0x8, scoped, tag = 'scoped memory for decode.1']
    #allocation8 [shape = 's32[2]{0}', space=sflag, size = 0x8, scoped, tag = 'scoped memory for decode.1']
    #allocation9 [shape = 'u8[8192]{0}', space=vmem, size = 0x2000, scoped, tag = 'output window, operand 0']
    #allocation10 [shape = 'u8[4096]{0}', space=vmem, size = 0x1000, scoped, tag = 'output window, operand 1, single buffered']
    #allocation11 [shape = 's32[1]{0}', space=sflag, size = 0x4, scoped, tag = 'scoped memory for decode.1']
    %19 = vsyncpa [#allocation7], 0
    %20 = vsyncpa [#allocation8], 0
    %s21 = scalar_lea.sflag [#allocation8], 1
    %22 = vsyncpa %s21, 0
    %23 = vsyncpa [#allocation11], 0
    loop: start=0, step=1, limit=10
    $region2: #{decode.1} parent=1 // loop_pre_header
      _
    $region3: #{decode.1} parent=1 // loop_header
      %s25 = sphi 0, %s29
      %p26 = scmp.ge.s32.totalorder %s25, 10
      %s33 = sphi 0, %s33
      %s35 = sphi 0, %s33
      %s36 = sphi 0, %s35
      %s50 = sphi 0, %s36
      %s54 = sphi 0, %s54
      %s56 = sphi 0, %s54
      %s57 = sphi 0, %s56
      %s71 = sphi 0, %s57
      %s75 = sphi 0, %s75
      %s77 = sphi 0, %s75
      %s78 = sphi 0, %s77
      %s92 = sphi 0, %s78
      %s96 = sphi 0, %s96
      %s98 = sphi 0, %s96
      %s99 = sphi 0, %s98
      %s113 = sphi 0, %s99
      %s117 = sphi 0, %s117
      %s119 = sphi 0, %s117
      %s120 = sphi 0, %s119
      %s134 = sphi 0, %s120
      %s140 = sphi 0, %s142
      %s143 = sphi 0, %s140
      %s144 = sphi 0, %s143
      %s160 = sphi 0, %s144
      %s164 = sphi 0, %s164
      %s166 = sphi 0, %s164
      %s167 = sphi 0, %s166
      %s181 = sphi 0, %s167
    $region4: #{decode.1} parent=1 // loop_header_branch
      %28 = sbr.rel (%p26) target = $region8
    $region5: #{decode.1} parent=1 // loop_body
      %s30 = ssub.s32 %s25, 1
      %s31 = ssub.s32 %s25, 2
      %s32 = sadd.s32 %s25, 1
      %s34 = sadd.s32 %s33, 1
      %p37 = scmp.eq.s32.totalorder %s25, 7
      %p38 = scmp.ne.s32.totalorder %s33, %s35
      %p39 = scmp.eq.s32.totalorder %s25, 0
      %p40 = por %p38, %p39
      %p41 = scmp.ne.s32.totalorder %s33, %s35
      %p42 = scmp.eq.s32.totalorder %s30, 7
      %p43 = por %p41, %p42
      %p44 = scmp.ne.s32.totalorder %s35, %s36
      %p45 = scmp.eq.s32.totalorder %s30, 0
      %p46 = por %p44, %p45
      %p47 = scmp.ne.s32.totalorder %s35, %s36
      %p48 = scmp.eq.s32.totalorder %s31, 7
      %p49 = por %p47, %p48
      %p51 = scmp.ne.s32.totalorder %s36, %s50
      %p52 = scmp.eq.s32.totalorder %s31, 0
      %p53 = por %p51, %p52
      %s55 = sadd.s32 %s54, 1
      %p58 = scmp.eq.s32.totalorder %s25, 7
      %p59 = scmp.ne.s32.totalorder %s54, %s56
      %p60 = scmp.eq.s32.totalorder %s25, 0
      %p61 = por %p59, %p60
      %p62 = scmp.ne.s32.totalorder %s54, %s56
      %p63 = scmp.eq.s32.totalorder %s30, 7
      %p64 = por %p62, %p63
      %p65 = scmp.ne.s32.totalorder %s56, %s57
      %p66 = scmp.eq.s32.totalorder %s30, 0
      %p67 = por %p65, %p66
      %p68 = scmp.ne.s32.totalorder %s56, %s57
      %p69 = scmp.eq.s32.totalorder %s31, 7
      %p70 = por %p68, %p69
      %p72 = scmp.ne.s32.totalorder %s57, %s71
      %p73 = scmp.eq.s32.totalorder %s31, 0
      %p74 = por %p72, %p73
      %s76 = sadd.s32 %s75, 1
      %p79 = scmp.eq.s32.totalorder %s25, 7
      %p80 = scmp.ne.s32.totalorder %s75, %s77
      %p81 = scmp.eq.s32.totalorder %s25, 0
      %p82 = por %p80, %p81
      %p83 = scmp.ne.s32.totalorder %s75, %s77
      %p84 = scmp.eq.s32.totalorder %s30, 7
      %p85 = por %p83, %p84
      %p86 = scmp.ne.s32.totalorder %s77, %s78
      %p87 = scmp.eq.s32.totalorder %s30, 0
      %p88 = por %p86, %p87
      %p89 = scmp.ne.s32.totalorder %s77, %s78
      %p90 = scmp.eq.s32.totalorder %s31, 7
      %p91 = por %p89, %p90
      %p93 = scmp.ne.s32.totalorder %s78, %s92
      %p94 = scmp.eq.s32.totalorder %s31, 0
      %p95 = por %p93, %p94
      %s97 = sadd.s32 %s96, 1
      %p100 = scmp.eq.s32.totalorder %s25, 7
      %p101 = scmp.ne.s32.totalorder %s96, %s98
      %p102 = scmp.eq.s32.totalorder %s25, 0
      %p103 = por %p101, %p102
      %p104 = scmp.ne.s32.totalorder %s96, %s98
      %p105 = scmp.eq.s32.totalorder %s30, 7
      %p106 = por %p104, %p105
      %p107 = scmp.ne.s32.totalorder %s98, %s99
      %p108 = scmp.eq.s32.totalorder %s30, 0
      %p109 = por %p107, %p108
      %p110 = scmp.ne.s32.totalorder %s98, %s99
      %p111 = scmp.eq.s32.totalorder %s31, 7
      %p112 = por %p110, %p111
      %p114 = scmp.ne.s32.totalorder %s99, %s113
      %p115 = scmp.eq.s32.totalorder %s31, 0
      %p116 = por %p114, %p115
      %s118 = sadd.s32 %s117, 1
      %p121 = scmp.eq.s32.totalorder %s25, 7
      %p122 = scmp.ne.s32.totalorder %s117, %s119
      %p123 = scmp.eq.s32.totalorder %s25, 0
      %p124 = por %p122, %p123
      %p125 = scmp.ne.s32.totalorder %s117, %s119
      %p126 = scmp.eq.s32.totalorder %s30, 7
      %p127 = por %p125, %p126
      %p128 = scmp.ne.s32.totalorder %s119, %s120
      %p129 = scmp.eq.s32.totalorder %s30, 0
      %p130 = por %p128, %p129
      %p131 = scmp.ne.s32.totalorder %s119, %s120
      %p132 = scmp.eq.s32.totalorder %s31, 7
      %p133 = por %p131, %p132
      %p135 = scmp.ne.s32.totalorder %s120, %s134
      %p136 = scmp.eq.s32.totalorder %s31, 0
      %p137 = por %p135, %p136
      %s138 = ssub.s32 %s25, %s32
      %p139 = scmp.eq.s32.totalorder %s138, 0
      %s141 = sadd.s32 %s140, 1
      %s142 = scalar_select %p139, %s140, %s141
      %p145 = pneg %p139
      %p146 = scmp.eq.s32.totalorder %s25, 7
      %p147 = por %p145, %p146
      %p148 = scmp.ne.s32.totalorder %s140, %s143
      %p149 = scmp.eq.s32.totalorder %s25, 0
      %p150 = por %p148, %p149
      %p151 = scmp.ne.s32.totalorder %s140, %s143
      %p152 = scmp.eq.s32.totalorder %s30, 7
      %p153 = por %p151, %p152
      %p154 = scmp.ne.s32.totalorder %s143, %s144
      %p155 = scmp.eq.s32.totalorder %s30, 0
      %p156 = por %p154, %p155
      %p157 = scmp.ne.s32.totalorder %s143, %s144
      %p158 = scmp.eq.s32.totalorder %s31, 7
      %p159 = por %p157, %p158
      %p161 = scmp.ne.s32.totalorder %s144, %s160
      %p162 = scmp.eq.s32.totalorder %s31, 0
      %p163 = por %p161, %p162
      %s165 = sadd.s32 %s164, 1
      %p168 = scmp.eq.s32.totalorder %s25, 7
      %p169 = scmp.ne.s32.totalorder %s164, %s166
      %p170 = scmp.eq.s32.totalorder %s25, 0
      %p171 = por %p169, %p170
      %p172 = scmp.ne.s32.totalorder %s164, %s166
      %p173 = scmp.eq.s32.totalorder %s30, 7
      %p174 = por %p172, %p173
      %p175 = scmp.ne.s32.totalorder %s166, %s167
      %p176 = scmp.eq.s32.totalorder %s30, 0
      %p177 = por %p175, %p176
      %p178 = scmp.ne.s32.totalorder %s166, %s167
      %p179 = scmp.eq.s32.totalorder %s31, 7
      %p180 = por %p178, %p179
      %p182 = scmp.ne.s32.totalorder %s167, %s181
      %p183 = scmp.eq.s32.totalorder %s31, 0
      %p184 = por %p182, %p183
      %p185 = scmp.le.s32.totalorder 1, %s25
      %p186 = scmp.lt.s32.totalorder %s25, 9
      %p187 = pnand %p185, %p186
      %p188 = pneg %p187
      // Predicated region
      $region9: #{decode.1} parent=5 // pred_check
        _
      $region10: #{decode.1} parent=5 // pred_check_branch
        %190 = sbr.rel (%p187) target = $region12
      $region11: #{decode.1} parent=5 // pred_region
        %s191 = ssub.s32 %s25, 1
        // Predicated region
        $region13: #{decode.1} parent=11 // pred_check
          %p192 = pneg %p46
        $region14: #{decode.1} parent=11 // pred_check_branch
          %194 = sbr.rel (%p192) target = $region16
        $region15: #{decode.1} parent=11 // pred_region
          _
        $region16: #{decode.1} parent=11 // pred_fallthru
          _
        // Predicated region
        $region17: #{decode.1} parent=11 // pred_check
          %p195 = pneg %p67
        $region18: #{decode.1} parent=11 // pred_check_branch
          %197 = sbr.rel (%p195) target = $region20
        $region19: #{decode.1} parent=11 // pred_region
          _
        $region20: #{decode.1} parent=11 // pred_fallthru
          _
        // Predicated region
        $region21: #{decode.1} parent=11 // pred_check
          %p198 = pneg %p88
        $region22: #{decode.1} parent=11 // pred_check_branch
          %200 = sbr.rel (%p198) target = $region24
        $region23: #{decode.1} parent=11 // pred_region
          _
        $region24: #{decode.1} parent=11 // pred_fallthru
          _
        // Predicated region
        $region25: #{decode.1} parent=11 // pred_check
          %p201 = pneg %p109
        $region26: #{decode.1} parent=11 // pred_check_branch
          %203 = sbr.rel (%p201) target = $region28
        $region27: #{decode.1} parent=11 // pred_region
          %s205 = ssub.s32 2560, 2560
          %206 = vsyncadd [#allocation7], %s205
          %s207 = sshll.u32 [#allocation6], 4
          %s208 = int_to_ptr.vmem [resolvable:$true] %s207
          %213 = dma.hbm_to_vmem [thread:$0]  %s4, 2560, %s208, [#allocation7], 640, 640, 40
        $region28: #{decode.1} parent=11 // pred_fallthru
          _
        // Predicated region
        $region29: #{decode.1} parent=11 // pred_check
          %p214 = pneg %p130
        $region30: #{decode.1} parent=11 // pred_check_branch
          %216 = sbr.rel (%p214) target = $region32
        $region31: #{decode.1} parent=11 // pred_region
          _
        $region32: #{decode.1} parent=11 // pred_fallthru
          _
      $region12: #{decode.1} parent=5 // pred_fallthru
        _
      %p217 = scmp.lt.s32.totalorder %s25, 8
      // Predicated region
      $region33: #{decode.1} parent=5 // pred_check
        %p218 = pneg %p217
      $region34: #{decode.1} parent=5 // pred_check_branch
        %220 = sbr.rel (%p218) target = $region36
      $region35: #{decode.1} parent=5 // pred_region
        _
      $region36: #{decode.1} parent=5 // pred_fallthru
        _
      %p221 = scmp.le.s32.totalorder 1, %s25
      %p222 = scmp.lt.s32.totalorder %s25, 9
      %p223 = pnand %p221, %p222
      %p224 = pneg %p223
      // Predicated region
      $region37: #{decode.1} parent=5 // pred_check
        _
      $region38: #{decode.1} parent=5 // pred_check_branch
        %226 = sbr.rel (%p223) target = $region40
      $region39: #{decode.1} parent=5 // pred_region
        %s227 = ssub.s32 %s25, 1
        // Predicated region
        $region41: #{decode.1} parent=39 // pred_check
          %p228 = pneg %p109
        $region42: #{decode.1} parent=39 // pred_check_branch
          %230 = sbr.rel (%p228) target = $region44
        $region43: #{decode.1} parent=39 // pred_region
          %231 = dma.done [#allocation7], 2560
        $region44: #{decode.1} parent=39 // pred_fallthru
          _
        %p232 = pneg %p46
        %p233 = pneg %p43
        %p234 = pneg %p67
        %p235 = pneg %p64
        %p236 = pneg %p88
        %p237 = pneg %p85
        %p238 = pneg %p109
        %p239 = pneg %p106
        %p240 = pneg %p130
        %p241 = pneg %p127
        %p242 = pneg %p156
        %p243 = pneg %p153
        %s244 = sand.u32 %s143, 1
        %s245 = scalar_lea.sflag [#allocation8], %s244
        %s246 = sand.u32 %s143, 1
        %s247 = smul.addr %s246, 8
        %s248 = scalar_lea.vmem [#allocation9], %s247
        %p249 = pneg %p177
        %p250 = pneg %p174
        %p251 = scmp.eq.s32.totalorder %s30, 0
        // Predicated region
        $region45: #{decode.1} parent=39 // pred_check
          %p252 = pneg %p251
        $region46: #{decode.1} parent=39 // pred_check_branch
          %254 = sbr.rel (%p252) target = $region48
        $region47: #{decode.1} parent=39 // pred_region
          %v255 = vld [vmem:[%s1] sm:$0xff]
          %vm256 = vcmask 261120
          %257 = vst.msk [vmem:[#allocation3] sm:$0xff] %vm256, %v255
        $region48: #{decode.1} parent=39 // pred_fallthru
          _
        %s258 = smul.u32 %s30, 128
        %s259 = sld [smem:[#allocation5 + %s258]]
        %s260 = scalar_lea.vmem %s3, %s259
        %v261 = vld [vmem:[%s260] sm:$0x1]
        %vm262 = vcmask 253952
        %263 = vst.msk [vmem:[#allocation2] sm:$0x1] %vm262, %v261
        %s264 = sadd.s32 %s258, 1
        %s265 = sld [smem:[#allocation5 + %s264]]
        %s266 = scalar_lea.vmem %s3, %s265
        %v267 = vld [vmem:[%s266] sm:$0x1]
        %268 = vst.msk [vmem:[#allocation2 + $0x1] sm:$0x1] %vm262, %v267
        %s269 = sadd.s32 %s258, 2
        %s270 = sld [smem:[#allocation5 + %s269]]
        %s271 = scalar_lea.vmem %s3, %s270
        %v272 = vld [vmem:[%s271] sm:$0x1]
        %273 = vst.msk [vmem:[#allocation2 + $0x2] sm:$0x1] %vm262, %v272
        %s274 = sadd.s32 %s258, 3
        %s275 = sld [smem:[#allocation5 + %s274]]
        %s276 = scalar_lea.vmem %s3, %s275
        %v277 = vld [vmem:[%s276] sm:$0x1]
        %278 = vst.msk [vmem:[#allocation2 + $0x3] sm:$0x1] %vm262, %v277
        %s279 = sadd.s32 %s258, 4
        %s280 = sld [smem:[#allocation5 + %s279]]
        %s281 = scalar_lea.vmem %s3, %s280
        %v282 = vld [vmem:[%s281] sm:$0x1]
        %283 = vst.msk [vmem:[#allocation2 + $0x4] sm:$0x1] %vm262, %v282
        %s284 = sadd.s32 %s258, 5
        %s285 = sld [smem:[#allocation5 + %s284]]
        %s286 = scalar_lea.vmem %s3, %s285
        %v287 = vld [vmem:[%s286] sm:$0x1]
        %288 = vst.msk [vmem:[#allocation2 + $0x5] sm:$0x1] %vm262, %v287
        %s289 = sadd.s32 %s258, 6
        %s290 = sld [smem:[#allocation5 + %s289]]
        %s291 = scalar_lea.vmem %s3, %s290
        %v292 = vld [vmem:[%s291] sm:$0x1]
        %293 = vst.msk [vmem:[#allocation2 + $0x6] sm:$0x1] %vm262, %v292
        %s294 = sadd.s32 %s258, 7
        %s295 = sld [smem:[#allocation5 + %s294]]
        %s296 = scalar_lea.vmem %s3, %s295
        %v297 = vld [vmem:[%s296] sm:$0x1]
        %298 = vst.msk [vmem:[#allocation2 + $0x7] sm:$0x1] %vm262, %v297
        %v299 = vld [vmem:[#allocation2] sm:$0xff]
        %v300 = vld [vmem:[#allocation3] sm:$0xff]
        %v301 = vld [vmem:[%s2] sm:$0xff]
        %v302 = vld [vmem:[%s2 + $0x8] sm:$0xff]
        %v303 = vld [vmem:[%s2 + $0x10] sm:$0xff]
        %v304 = vld [vmem:[%s2 + $0x18] sm:$0xff]
        %v305 = vld [vmem:[%s2 + $0x20] sm:$0xff]
        %v306 = vld [vmem:[%s2 + $0x28] sm:$0xff]
        %v307 = vld [vmem:[%s2 + $0x30] sm:$0xff]
        %v308 = vld [vmem:[%s2 + $0x38] sm:$0xff]
        %v309 = vld [vmem:[#allocation6] sm:$0xff]
        %v310 = vld [vmem:[#allocation6 + $0x28] sm:$0xff]
        %v311 = vld [vmem:[#allocation6 + $0x50] sm:$0xff]
        %v312 = vld [vmem:[#allocation6 + $0x78] sm:$0xff]
        %v313 = vld [vmem:[%s5] sm:$0x1]
        %v315 = vlaneseq
        %v316 = vshrl.u32 %v315, 7
        %v317 = vsub.s32 0, %v316
        %v318 = vrot.slane %v313, %v317
        %vm320 = vcmask 261120
        %v322 = vsel %vm320, %v299, 0
        %324 = vmatprep.subr.mxu0 0.0
        %325 = vmatpush1.msra.mxu0 0.0
        %326 = vmatprep.subr.mxu0 0.0
        %327 = vmatpush1.msra.mxu0 0.0
        %328 = vmatprep.subr.mxu0 0.0
        %329 = vmatpush1.msra.mxu0 0.0
        %330 = vmatprep.subr.mxu0 0.0
        %331 = vmatpush1.msra.mxu0 0.0
        %332 = vmatprep.subr.mxu0 0.0
        %333 = vmatpush1.msra.mxu0 0.0
        %334 = vmatprep.subr.mxu0 0.0
        %335 = vmatpush1.msra.mxu0 0.0
        %336 = vmatprep.subr.mxu0 0.0
        %337 = vmatpush1.msra.mxu0 0.0
        %338 = vmatprep.subr.mxu0 0.0
        %339 = vmatpush1.msra.mxu0 0.0
        %340 = vmatprep.subr.mxu0 0.0
        %341 = vmatpush1.msra.mxu0 0.0
        %342 = vmatprep.subr.mxu0 0.0
        %343 = vmatpush1.msra.mxu0 0.0
        %344 = vmatprep.subr.mxu0 0.0
        %345 = vmatpush1.msra.mxu0 0.0
        %346 = vmatprep.subr.mxu0 0.0
        %347 = vmatpush1.msra.mxu0 0.0
        %348 = vmatprep.subr.mxu0 0.0
        %349 = vmatpush1.msra.mxu0 %v312
        %350 = vmatprep.subr.mxu0 0.0
        %351 = vmatpush1.msra.mxu0 %v311
        %352 = vmatprep.subr.mxu0 0.0
        %353 = vmatpush1.msra.mxu0 %v310
        %354 = vmatprep.subr.mxu0 0.0
        %355 = vmatpush1.msra.mxu0 %v309
        %356 = vmatprep.subr.mxu0 0.0
        %357 = vmatpush2.msra.mxu0 0.0
        %358 = vmatprep.subr.mxu0 0.0
        %359 = vmatpush2.msra.mxu0 0.0
        %360 = vmatprep.subr.mxu0 0.0
        %361 = vmatpush2.msra.mxu0 0.0
        %362 = vmatprep.subr.mxu0 0.0
        %363 = vmatpush2.msra.mxu0 0.0
        %364 = vmatprep.subr.mxu0 0.0
        %365 = vmatpush2.msra.mxu0 0.0
        %366 = vmatprep.subr.mxu0 0.0
        %367 = vmatpush2.msra.mxu0 0.0
        %368 = vmatprep.subr.mxu0 0.0
        %369 = vmatpush2.msra.mxu0 0.0
        %370 = vmatprep.subr.mxu0 0.0
        %371 = vmatpush2.msra.mxu0 0.0
        %372 = vmatprep.subr.mxu0 0.0
        %373 = vmatpush2.msra.mxu0 0.0
        %374 = vmatprep.subr.mxu0 0.0
        %375 = vmatpush2.msra.mxu0 0.0
        %376 = vmatprep.subr.mxu0 0.0
        %377 = vmatpush2.msra.mxu0 0.0
        %378 = vmatprep.subr.mxu0 0.0
        %379 = vmatpush2.msra.mxu0 0.0
        %380 = vmatprep.subr.mxu0 0.0
        %381 = vmatpush2.msra.mxu0 0.0
        %382 = vmatprep.subr.mxu0 0.0
        %383 = vmatpush2.msra.mxu0 0.0
        %384 = vmatprep.subr.mxu0 0.0
        %385 = vmatpush2.msra.mxu0 0.0
        %386 = vmatprep.subr.mxu0 0.0
        %387 = vmatpush2.msra.mxu0 0.0
        %388 = vmatprep.mubr.f32.mxu0 0.0
        %389 = vmatmul.mubr.f32.gmra.mxu0 %v322
        %v390 = vpop.f32.mrf.mxu0
        %v391 = vadd.f32 %v318, %v390
        %v392 = vpop.f32.mrf.mxu0
        %393 = vdwg.mxu0
        %v394 = vld [vmem:[#allocation6 + $0x8] sm:$0xff]
        %v395 = vld [vmem:[#allocation6 + $0x30] sm:$0xff]
        %v396 = vld [vmem:[#allocation6 + $0x58] sm:$0xff]
        %v397 = vld [vmem:[#allocation6 + $0x80] sm:$0xff]
        %v398 = vld [vmem:[%s5 + $0x1] sm:$0x1]
        %v400 = vlaneseq
        %v401 = vshrl.u32 %v400, 7
        %v402 = vsub.s32 0, %v401
        %v403 = vrot.slane %v398, %v402
        %v406 = vsel %vm320, %v300, 0
        %408 = vmatprep.subr.mxu0 0.0
        %409 = vmatpush1.msra.mxu0 0.0
        %410 = vmatprep.subr.mxu0 0.0
        %411 = vmatpush1.msra.mxu0 0.0
        %412 = vmatprep.subr.mxu0 0.0
        %413 = vmatpush1.msra.mxu0 0.0
        %414 = vmatprep.subr.mxu0 0.0
        %415 = vmatpush1.msra.mxu0 0.0
        %416 = vmatprep.subr.mxu0 0.0
        %417 = vmatpush1.msra.mxu0 0.0
        %418 = vmatprep.subr.mxu0 0.0
        %419 = vmatpush1.msra.mxu0 0.0
        %420 = vmatprep.subr.mxu0 0.0
        %421 = vmatpush1.msra.mxu0 0.0
        %422 = vmatprep.subr.mxu0 0.0
        %423 = vmatpush1.msra.mxu0 0.0
        %424 = vmatprep.subr.mxu0 0.0
        %425 = vmatpush1.msra.mxu0 0.0
        %426 = vmatprep.subr.mxu0 0.0
        %427 = vmatpush1.msra.mxu0 0.0
        %428 = vmatprep.subr.mxu0 0.0
        %429 = vmatpush1.msra.mxu0 0.0
        %430 = vmatprep.subr.mxu0 0.0
        %431 = vmatpush1.msra.mxu0 0.0
        %432 = vmatprep.subr.mxu0 0.0
        %433 = vmatpush1.msra.mxu0 %v397
        %434 = vmatprep.subr.mxu0 0.0
        %435 = vmatpush1.msra.mxu0 %v396
        %436 = vmatprep.subr.mxu0 0.0
        %437 = vmatpush1.msra.mxu0 %v395
        %438 = vmatprep.subr.mxu0 0.0
        %439 = vmatpush1.msra.mxu0 %v394
        %440 = vmatprep.subr.mxu0 0.0
        %441 = vmatpush2.msra.mxu0 0.0
        %442 = vmatprep.subr.mxu0 0.0
        %443 = vmatpush2.msra.mxu0 0.0
        %444 = vmatprep.subr.mxu0 0.0
        %445 = vmatpush2.msra.mxu0 0.0
        %446 = vmatprep.subr.mxu0 0.0
        %447 = vmatpush2.msra.mxu0 0.0
        %448 = vmatprep.subr.mxu0 0.0
        %449 = vmatpush2.msra.mxu0 0.0
        %450 = vmatprep.subr.mxu0 0.0
        %451 = vmatpush2.msra.mxu0 0.0
        %452 = vmatprep.subr.mxu0 0.0
        %453 = vmatpush2.msra.mxu0 0.0
        %454 = vmatprep.subr.mxu0 0.0
        %455 = vmatpush2.msra.mxu0 0.0
        %456 = vmatprep.subr.mxu0 0.0
        %457 = vmatpush2.msra.mxu0 0.0
        %458 = vmatprep.subr.mxu0 0.0
        %459 = vmatpush2.msra.mxu0 0.0
        %460 = vmatprep.subr.mxu0 0.0
        %461 = vmatpush2.msra.mxu0 0.0
        %462 = vmatprep.subr.mxu0 0.0
        %463 = vmatpush2.msra.mxu0 0.0
        %464 = vmatprep.subr.mxu0 0.0
        %465 = vmatpush2.msra.mxu0 0.0
        %466 = vmatprep.subr.mxu0 0.0
        %467 = vmatpush2.msra.mxu0 0.0
        %468 = vmatprep.subr.mxu0 0.0
        %469 = vmatpush2.msra.mxu0 0.0
        %470 = vmatprep.subr.mxu0 0.0
        %471 = vmatpush2.msra.mxu0 0.0
        %472 = vmatprep.mubr.f32.mxu0 0.0
        %473 = vmatmul.mubr.f32.gmra.mxu0 %v406
        %v474 = vpop.f32.mrf.mxu0
        %v475 = vadd.f32 %v403, %v474
        %v476 = vpop.f32.mrf.mxu0
        %477 = vdwg.mxu0
        %v478 = vadd.f32 %v391, %v475
        %v479 = vxor.u32 %v478, 2147483648
        %v480 = vmul.f32 %v479, 1.442695
        %v481 = vpow.pop %v480
        %v482 = vadd.f32 %v481, 1.0
        %v483 = vrcp.pop %v482
        %v484 = vmul.f32 1.0, %v483
        %486 = vrot.lane.b32.xlu0 %v475, 64
        %v487 = vpop.permute.xlu0 %486
        %v489 = vmul.f32 %v484, %v487
        %491 = vrot.lane.b32.xlu0 %v489, 64
        %v492 = vpop.permute.xlu0 %491
        %v494 = vadd.f32 %v391, %v492
        %v495 = vtanh.pop %v494
        %v496 = vsub.f32 1.0, %v484
        %498 = vrot.lane.b32.xlu0 %v495, 96
        %v499 = vpop.permute.xlu0 %498
        %v501 = vmul.f32 %v496, %v499
        %502 = vrot.lane.b32.xlu0 %v300, 32
        %v503 = vpop.permute.xlu0 %502
        %v505 = vmul.f32 %v484, %v503
        %v506 = vadd.f32 %v501, %v505
        %v507 = vld [vmem:[#allocation6 + $0x10] sm:$0xff]
        %v508 = vld [vmem:[#allocation6 + $0x38] sm:$0xff]
        %v509 = vld [vmem:[#allocation6 + $0x60] sm:$0xff]
        %v510 = vld [vmem:[#allocation6 + $0x88] sm:$0xff]
        %512 = vrot.lane.b32.xlu0 %v506, 96
        %v513 = vpop.permute.xlu0 %512
        %v514 = vsel %vm320, %v513, 0
        %516 = vmatprep.subr.mxu0 0.0
        %517 = vmatpush1.msra.mxu0 0.0
        %518 = vmatprep.subr.mxu0 0.0
        %519 = vmatpush1.msra.mxu0 0.0
        %520 = vmatprep.subr.mxu0 0.0
        %521 = vmatpush1.msra.mxu0 0.0
        %522 = vmatprep.subr.mxu0 0.0
        %523 = vmatpush1.msra.mxu0 0.0
        %524 = vmatprep.subr.mxu0 0.0
        %525 = vmatpush1.msra.mxu0 0.0
        %526 = vmatprep.subr.mxu0 0.0
        %527 = vmatpush1.msra.mxu0 0.0
        %528 = vmatprep.subr.mxu0 0.0
        %529 = vmatpush1.msra.mxu0 0.0
        %530 = vmatprep.subr.mxu0 0.0
        %531 = vmatpush1.msra.mxu0 0.0
        %532 = vmatprep.subr.mxu0 0.0
        %533 = vmatpush1.msra.mxu0 0.0
        %534 = vmatprep.subr.mxu0 0.0
        %535 = vmatpush1.msra.mxu0 0.0
        %536 = vmatprep.subr.mxu0 0.0
        %537 = vmatpush1.msra.mxu0 0.0
        %538 = vmatprep.subr.mxu0 0.0
        %539 = vmatpush1.msra.mxu0 0.0
        %540 = vmatprep.subr.mxu0 0.0
        %541 = vmatpush1.msra.mxu0 %v510
        %542 = vmatprep.subr.mxu0 0.0
        %543 = vmatpush1.msra.mxu0 %v509
        %544 = vmatprep.subr.mxu0 0.0
        %545 = vmatpush1.msra.mxu0 %v508
        %546 = vmatprep.subr.mxu0 0.0
        %547 = vmatpush1.msra.mxu0 %v507
        %548 = vmatprep.subr.mxu0 0.0
        %549 = vmatpush2.msra.mxu0 0.0
        %550 = vmatprep.subr.mxu0 0.0
        %551 = vmatpush2.msra.mxu0 0.0
        %552 = vmatprep.subr.mxu0 0.0
        %553 = vmatpush2.msra.mxu0 0.0
        %554 = vmatprep.subr.mxu0 0.0
        %555 = vmatpush2.msra.mxu0 0.0
        %556 = vmatprep.subr.mxu0 0.0
        %557 = vmatpush2.msra.mxu0 0.0
        %558 = vmatprep.subr.mxu0 0.0
        %559 = vmatpush2.msra.mxu0 0.0
        %560 = vmatprep.subr.mxu0 0.0
        %561 = vmatpush2.msra.mxu0 0.0
        %562 = vmatprep.subr.mxu0 0.0
        %563 = vmatpush2.msra.mxu0 0.0
        %564 = vmatprep.subr.mxu0 0.0
        %565 = vmatpush2.msra.mxu0 0.0
        %566 = vmatprep.subr.mxu0 0.0
        %567 = vmatpush2.msra.mxu0 0.0
        %568 = vmatprep.subr.mxu0 0.0
        %569 = vmatpush2.msra.mxu0 0.0
        %570 = vmatprep.subr.mxu0 0.0
        %571 = vmatpush2.msra.mxu0 0.0
        %572 = vmatprep.subr.mxu0 0.0
        %573 = vmatpush2.msra.mxu0 0.0
        %574 = vmatprep.subr.mxu0 0.0
        %575 = vmatpush2.msra.mxu0 0.0
        %576 = vmatprep.subr.mxu0 0.0
        %577 = vmatpush2.msra.mxu0 0.0
        %578 = vmatprep.subr.mxu0 0.0
        %579 = vmatpush2.msra.mxu0 0.0
        %580 = vmatprep.mubr.f32.mxu0 0.0
        %581 = vmatmul.mubr.f32.gmra.mxu0 %v514
        %v582 = vpop.f32.mrf.mxu0
        %v583 = vadd.f32 0.0, %v582
        %v584 = vpop.f32.mrf.mxu0
        %585 = vdwg.mxu0
        %v586 = vld [vmem:[%s5 + $0x2] sm:$0x1]
        %v588 = vlaneseq
        %v589 = vshrl.u32 %v588, 7
        %v590 = vsub.s32 0, %v589
        %v591 = vrot.slane %v586, %v590
        %592 = vrot.lane.b32.xlu0 %v591, 32
        %v593 = vpop.permute.xlu0 %592
        %v595 = vmul.f32 %v506, %v593
        %597 = vrot.lane.b32.xlu0 %v595, 96
        %v598 = vpop.permute.xlu0 %597
        %v600 = vsel %vm320, %v598, 0.0
        %601 = vadd.xlane.f32.xlu0 %v600
        %v602 = vpop.xlane.xlu0 %601
        %v604 = vcombine.high %v583, %v583
        %v606 = vunpack.c.l.s4 1966171168
        %v607 = vunpack.c.0.s8 %v606
        %v608 = vlaneseq
        %v609 = vshrl.u32 %v608, 7
        %v610 = vsub.s32 %v607, %v609
        %v611 = vrot.slane %v583, %v610
        %v613 = vunpack.c.l.s4 1966171168
        %v614 = vunpack.c.0.s8 %v613
        %v615 = vlaneseq
        %v616 = vshrl.u32 %v615, 7
        %v617 = vsub.s32 %v614, %v616
        %v618 = vrot.slane %v604, %v617
        %v619 = vcombine.high %v611, %v611
        %v620 = vcombine.high %v618, %v618
        %v622 = vunpack.c.l.s4 1966171168
        %v623 = vunpack.c.0.s8 %v622
        %v624 = vlaneseq
        %v625 = vshrl.u32 %v624, 7
        %v626 = vsub.s32 %v623, %v625
        %v627 = vrot.slane %v611, %v626
        %v629 = vunpack.c.l.s4 1966171168
        %v630 = vunpack.c.0.s8 %v629
        %v631 = vlaneseq
        %v632 = vshrl.u32 %v631, 7
        %v633 = vsub.s32 %v630, %v632
        %v634 = vrot.slane %v618, %v633
        %v636 = vunpack.c.l.s4 1966171168
        %v637 = vunpack.c.0.s8 %v636
        %v638 = vlaneseq
        %v639 = vshrl.u32 %v638, 7
        %v640 = vsub.s32 %v637, %v639
        %v641 = vrot.slane %v619, %v640
        %v643 = vunpack.c.l.s4 1966171168
        %v644 = vunpack.c.0.s8 %v643
        %v645 = vlaneseq
        %v646 = vshrl.u32 %v645, 7
        %v647 = vsub.s32 %v644, %v646
        %v648 = vrot.slane %v620, %v647
        %v649 = vcombine.high %v627, %v627
        %v650 = vcombine.high %v634, %v634
        %v651 = vcombine.high %v641, %v641
        %v652 = vcombine.high %v648, %v648
        %v653 = vlaneseq
        %v654 = vshrl.u32 %v653, 7
        %v655 = vsub.s32 0, %v654
        %v656 = vrot.slane %v627, %v655
        %v657 = vlaneseq
        %v658 = vshrl.u32 %v657, 7
        %v659 = vsub.s32 0, %v658
        %v660 = vrot.slane %v641, %v659
        %v661 = vlaneseq
        %v662 = vshrl.u32 %v661, 7
        %v663 = vsub.s32 0, %v662
        %v664 = vrot.slane %v649, %v663
        %v665 = vlaneseq
        %v666 = vshrl.u32 %v665, 7
        %v667 = vsub.s32 0, %v666
        %v668 = vrot.slane %v651, %v667
        %v669 = vlaneseq
        %v670 = vshrl.u32 %v669, 7
        %v671 = vsub.s32 0, %v670
        %v672 = vrot.slane %v634, %v671
        %v673 = vlaneseq
        %v674 = vshrl.u32 %v673, 7
        %v675 = vsub.s32 0, %v674
        %v676 = vrot.slane %v648, %v675
        %v677 = vlaneseq
        %v678 = vshrl.u32 %v677, 7
        %v679 = vsub.s32 0, %v678
        %v680 = vrot.slane %v650, %v679
        %v681 = vlaneseq
        %v682 = vshrl.u32 %v681, 7
        %v683 = vsub.s32 0, %v682
        %v684 = vrot.slane %v652, %v683
        %v693 = vmul.f32 %v301, %v656
        %v694 = vmul.f32 %v302, %v660
        %v695 = vmul.f32 %v303, %v664
        %v696 = vmul.f32 %v304, %v668
        %v697 = vmul.f32 %v305, %v672
        %v698 = vmul.f32 %v306, %v676
        %v699 = vmul.f32 %v307, %v680
        %v700 = vmul.f32 %v308, %v684
        %v701 = vsel %vm320, %v693, 0.0
        %702 = vadd.xlane.f32.xlu0 %v701
        %v703 = vpop.xlane.xlu0 %702
        %v704 = vsel %vm320, %v694, 0.0
        %705 = vadd.xlane.f32.xlu0 %v704
        %v706 = vpop.xlane.xlu0 %705
        %v707 = vsel %vm320, %v695, 0.0
        %708 = vadd.xlane.f32.xlu0 %v707
        %v709 = vpop.xlane.xlu0 %708
        %v710 = vsel %vm320, %v696, 0.0
        %711 = vadd.xlane.f32.xlu0 %v710
        %v712 = vpop.xlane.xlu0 %711
        %v713 = vsel %vm320, %v697, 0.0
        %714 = vadd.xlane.f32.xlu0 %v713
        %v715 = vpop.xlane.xlu0 %714
        %v716 = vsel %vm320, %v698, 0.0
        %717 = vadd.xlane.f32.xlu0 %v716
        %v718 = vpop.xlane.xlu0 %717
        %v719 = vsel %vm320, %v699, 0.0
        %720 = vadd.xlane.f32.xlu0 %v719
        %v721 = vpop.xlane.xlu0 %720
        %v722 = vsel %vm320, %v700, 0.0
        %723 = vadd.xlane.f32.xlu0 %v722
        %v724 = vpop.xlane.xlu0 %723
        %v726 = vlaneseq
        %v727 = vshrl.u32 %v726, 7
        %v728 = vsub.s32 0, %v727
        %v729 = vrot.slane %v602, %v728
        %v730 = vlaneseq
        %v731 = vshrl.u32 %v730, 7
        %v732 = vsub.s32 1, %v731
        %v733 = vrot.slane %v602, %v732
        %v734 = vlaneseq
        %v735 = vshrl.u32 %v734, 7
        %v736 = vsub.s32 2, %v735
        %v737 = vrot.slane %v602, %v736
        %v738 = vlaneseq
        %v739 = vshrl.u32 %v738, 7
        %v740 = vsub.s32 3, %v739
        %v741 = vrot.slane %v602, %v740
        %v742 = vlaneseq
        %v743 = vshrl.u32 %v742, 7
        %v744 = vsub.s32 4, %v743
        %v745 = vrot.slane %v602, %v744
        %v746 = vlaneseq
        %v747 = vshrl.u32 %v746, 7
        %v748 = vsub.s32 5, %v747
        %v749 = vrot.slane %v602, %v748
        %v750 = vlaneseq
        %v751 = vshrl.u32 %v750, 7
        %v752 = vsub.s32 6, %v751
        %v753 = vrot.slane %v602, %v752
        %v754 = vlaneseq
        %v755 = vshrl.u32 %v754, 7
        %v756 = vsub.s32 7, %v755
        %v757 = vrot.slane %v602, %v756
        %v766 = vadd.f32 %v703, %v729
        %v767 = vadd.f32 %v706, %v733
        %v768 = vadd.f32 %v709, %v737
        %v769 = vadd.f32 %v712, %v741
        %v770 = vadd.f32 %v715, %v745
        %v771 = vadd.f32 %v718, %v749
        %v772 = vadd.f32 %v721, %v753
        %v773 = vadd.f32 %v724, %v757
        %782 = vset.pattern.permute.xlu0 0
        %783 = vperm.xlu0 %782, %v766
        %v784 = vpop.permute.xlu0 %783
        %785 = vset.pattern.permute.xlu0 0
        %786 = vperm.xlu0 %785, %v767
        %v787 = vpop.permute.xlu0 %786
        %788 = vset.pattern.permute.xlu0 0
        %789 = vperm.xlu0 %788, %v768
        %v790 = vpop.permute.xlu0 %789
        %791 = vset.pattern.permute.xlu0 0
        %792 = vperm.xlu0 %791, %v769
        %v793 = vpop.permute.xlu0 %792
        %794 = vset.pattern.permute.xlu0 0
        %795 = vperm.xlu0 %794, %v770
        %v796 = vpop.permute.xlu0 %795
        %797 = vset.pattern.permute.xlu0 0
        %798 = vperm.xlu0 %797, %v771
        %v799 = vpop.permute.xlu0 %798
        %800 = vset.pattern.permute.xlu0 0
        %801 = vperm.xlu0 %800, %v772
        %v802 = vpop.permute.xlu0 %801
        %803 = vset.pattern.permute.xlu0 0
        %804 = vperm.xlu0 %803, %v773
        %v805 = vpop.permute.xlu0 %804
        %v806 = vlaneseq
        %v807 = vand.u32 %v806, 127
        %v808 = vlaneseq
        %v809 = vshrl.u32 %v808, 7
        %v810 = vsub.s32 %v807, %v809
        %v811 = vrot.slane %v784, %v810
        %v812 = vlaneseq
        %v813 = vshrl.u32 %v812, 7
        %v814 = vsub.s32 %v807, %v813
        %v815 = vrot.slane %v787, %v814
        %v816 = vlaneseq
        %v817 = vshrl.u32 %v816, 7
        %v818 = vsub.s32 %v807, %v817
        %v819 = vrot.slane %v790, %v818
        %v820 = vlaneseq
        %v821 = vshrl.u32 %v820, 7
        %v822 = vsub.s32 %v807, %v821
        %v823 = vrot.slane %v793, %v822
        %v824 = vlaneseq
        %v825 = vshrl.u32 %v824, 7
        %v826 = vsub.s32 %v807, %v825
        %v827 = vrot.slane %v796, %v826
        %v828 = vlaneseq
        %v829 = vshrl.u32 %v828, 7
        %v830 = vsub.s32 %v807, %v829
        %v831 = vrot.slane %v799, %v830
        %v832 = vlaneseq
        %v833 = vshrl.u32 %v832, 7
        %v834 = vsub.s32 %v807, %v833
        %v835 = vrot.slane %v802, %v834
        %v836 = vlaneseq
        %v837 = vshrl.u32 %v836, 7
        %v838 = vsub.s32 %v807, %v837
        %v839 = vrot.slane %v805, %v838
        %vm840 = vcmask 1041409
        %v841 = vsel %vm840, %v815, %v811
        %vm842 = vcmask 1042434
        %v843 = vsel %vm842, %v819, %v841
        %vm844 = vcmask 1043459
        %v845 = vsel %vm844, %v823, %v843
        %vm846 = vcmask 1044484
        %v847 = vsel %vm846, %v827, %v845
        %vm848 = vcmask 1045509
        %v849 = vsel %vm848, %v831, %v847
        %vm850 = vcmask 1046534
        %v851 = vsel %vm850, %v835, %v849
        %vm852 = vcmask 1047559
        %v853 = vsel %vm852, %v839, %v851
        %vm855 = vcmask 64512
        %v856 = vsel %vm855, %v853, -inf
        %857 = vmax.xlane.f32.xlu0 %v856
        %v858 = vpop.xlane.xlu0 %857
        %v860 = vlaneseq
        %v861 = vshrl.u32 %v860, 7
        %v862 = vsub.s32 0, %v861
        %v863 = vrot.slane %v858, %v862
        %v864 = vlaneseq
        %v865 = vshrl.u32 %v864, 7
        %v866 = vsub.s32 1, %v865
        %v867 = vrot.slane %v858, %v866
        %v868 = vlaneseq
        %v869 = vshrl.u32 %v868, 7
        %v870 = vsub.s32 2, %v869
        %v871 = vrot.slane %v858, %v870
        %v872 = vlaneseq
        %v873 = vshrl.u32 %v872, 7
        %v874 = vsub.s32 3, %v873
        %v875 = vrot.slane %v858, %v874
        %v876 = vlaneseq
        %v877 = vshrl.u32 %v876, 7
        %v878 = vsub.s32 4, %v877
        %v879 = vrot.slane %v858, %v878
        %v880 = vlaneseq
        %v881 = vshrl.u32 %v880, 7
        %v882 = vsub.s32 5, %v881
        %v883 = vrot.slane %v858, %v882
        %v884 = vlaneseq
        %v885 = vshrl.u32 %v884, 7
        %v886 = vsub.s32 6, %v885
        %v887 = vrot.slane %v858, %v886
        %v888 = vlaneseq
        %v889 = vshrl.u32 %v888, 7
        %v890 = vsub.s32 7, %v889
        %v891 = vrot.slane %v858, %v890
        %v900 = vsub.f32 %v766, %v863
        %v901 = vsub.f32 %v767, %v867
        %v902 = vsub.f32 %v768, %v871
        %v903 = vsub.f32 %v769, %v875
        %v904 = vsub.f32 %v770, %v879
        %v905 = vsub.f32 %v771, %v883
        %v906 = vsub.f32 %v772, %v887
        %v907 = vsub.f32 %v773, %v891
        %v908 = vmul.f32 %v900, 1.442695
        %v909 = vpow.pop %v908
        %v910 = vmul.f32 %v901, 1.442695
        %v911 = vpow.pop %v910
        %v912 = vmul.f32 %v902, 1.442695
        %v913 = vpow.pop %v912
        %v914 = vmul.f32 %v903, 1.442695
        %v915 = vpow.pop %v914
        %v916 = vmul.f32 %v904, 1.442695
        %v917 = vpow.pop %v916
        %v918 = vmul.f32 %v905, 1.442695
        %v919 = vpow.pop %v918
        %v920 = vmul.f32 %v906, 1.442695
        %v921 = vpow.pop %v920
        %v922 = vmul.f32 %v907, 1.442695
        %v923 = vpow.pop %v922
        %932 = vset.pattern.permute.xlu0 0
        %933 = vperm.xlu0 %932, %v909
        %v934 = vpop.permute.xlu0 %933
        %935 = vset.pattern.permute.xlu0 0
        %936 = vperm.xlu0 %935, %v911
        %v937 = vpop.permute.xlu0 %936
        %938 = vset.pattern.permute.xlu0 0
        %939 = vperm.xlu0 %938, %v913
        %v940 = vpop.permute.xlu0 %939
        %941 = vset.pattern.permute.xlu0 0
        %942 = vperm.xlu0 %941, %v915
        %v943 = vpop.permute.xlu0 %942
        %944 = vset.pattern.permute.xlu0 0
        %945 = vperm.xlu0 %944, %v917
        %v946 = vpop.permute.xlu0 %945
        %947 = vset.pattern.permute.xlu0 0
        %948 = vperm.xlu0 %947, %v919
        %v949 = vpop.permute.xlu0 %948
        %950 = vset.pattern.permute.xlu0 0
        %951 = vperm.xlu0 %950, %v921
        %v952 = vpop.permute.xlu0 %951
        %953 = vset.pattern.permute.xlu0 0
        %954 = vperm.xlu0 %953, %v923
        %v955 = vpop.permute.xlu0 %954
        %v956 = vlaneseq
        %v957 = vshrl.u32 %v956, 7
        %v958 = vsub.s32 %v807, %v957
        %v959 = vrot.slane %v934, %v958
        %v960 = vlaneseq
        %v961 = vshrl.u32 %v960, 7
        %v962 = vsub.s32 %v807, %v961
        %v963 = vrot.slane %v937, %v962
        %v964 = vlaneseq
        %v965 = vshrl.u32 %v964, 7
        %v966 = vsub.s32 %v807, %v965
        %v967 = vrot.slane %v940, %v966
        %v968 = vlaneseq
        %v969 = vshrl.u32 %v968, 7
        %v970 = vsub.s32 %v807, %v969
        %v971 = vrot.slane %v943, %v970
        %v972 = vlaneseq
        %v973 = vshrl.u32 %v972, 7
        %v974 = vsub.s32 %v807, %v973
        %v975 = vrot.slane %v946, %v974
        %v976 = vlaneseq
        %v977 = vshrl.u32 %v976, 7
        %v978 = vsub.s32 %v807, %v977
        %v979 = vrot.slane %v949, %v978
        %v980 = vlaneseq
        %v981 = vshrl.u32 %v980, 7
        %v982 = vsub.s32 %v807, %v981
        %v983 = vrot.slane %v952, %v982
        %v984 = vlaneseq
        %v985 = vshrl.u32 %v984, 7
        %v986 = vsub.s32 %v807, %v985
        %v987 = vrot.slane %v955, %v986
        %v988 = vsel %vm840, %v963, %v959
        %v989 = vsel %vm842, %v967, %v988
        %v990 = vsel %vm844, %v971, %v989
        %v991 = vsel %vm846, %v975, %v990
        %v992 = vsel %vm848, %v979, %v991
        %v993 = vsel %vm850, %v983, %v992
        %v994 = vsel %vm852, %v987, %v993
        %v996 = vsel %vm855, %v994, 0.0
        %997 = vadd.xlane.f32.xlu0 %v996
        %v998 = vpop.xlane.xlu0 %997
        %v999 = vrcp.pop %v998
        %v1001 = vlaneseq
        %v1002 = vshrl.u32 %v1001, 7
        %v1003 = vsub.s32 0, %v1002
        %v1004 = vrot.slane %v999, %v1003
        %v1005 = vlaneseq
        %v1006 = vshrl.u32 %v1005, 7
        %v1007 = vsub.s32 1, %v1006
        %v1008 = vrot.slane %v999, %v1007
        %v1009 = vlaneseq
        %v1010 = vshrl.u32 %v1009, 7
        %v1011 = vsub.s32 2, %v1010
        %v1012 = vrot.slane %v999, %v1011
        %v1013 = vlaneseq
        %v1014 = vshrl.u32 %v1013, 7
        %v1015 = vsub.s32 3, %v1014
        %v1016 = vrot.slane %v999, %v1015
        %v1017 = vlaneseq
        %v1018 = vshrl.u32 %v1017, 7
        %v1019 = vsub.s32 4, %v1018
        %v1020 = vrot.slane %v999, %v1019
        %v1021 = vlaneseq
        %v1022 = vshrl.u32 %v1021, 7
        %v1023 = vsub.s32 5, %v1022
        %v1024 = vrot.slane %v999, %v1023
        %v1025 = vlaneseq
        %v1026 = vshrl.u32 %v1025, 7
        %v1027 = vsub.s32 6, %v1026
        %v1028 = vrot.slane %v999, %v1027
        %v1029 = vlaneseq
        %v1030 = vshrl.u32 %v1029, 7
        %v1031 = vsub.s32 7, %v1030
        %v1032 = vrot.slane %v999, %v1031
        %v1041 = vmul.f32 %v909, %v1004
        %v1042 = vmul.f32 %v911, %v1008
        %v1043 = vmul.f32 %v913, %v1012
        %v1044 = vmul.f32 %v915, %v1016
        %v1045 = vmul.f32 %v917, %v1020
        %v1046 = vmul.f32 %v919, %v1024
        %v1047 = vmul.f32 %v921, %v1028
        %v1048 = vmul.f32 %v923, %v1032
        %1050 = vset.pattern.permute.xlu0 0
        %1051 = vperm.xlu0 %1050, %v1041
        %v1052 = vpop.permute.xlu0 %1051
        %1055 = vset.pattern.permute.xlu0 0
        %1056 = vperm.xlu0 %1055, %v1042
        %v1057 = vpop.permute.xlu0 %1056
        %1060 = vset.pattern.permute.xlu0 0
        %1061 = vperm.xlu0 %1060, %v1043
        %v1062 = vpop.permute.xlu0 %1061
        %1065 = vset.pattern.permute.xlu0 0
        %1066 = vperm.xlu0 %1065, %v1044
        %v1067 = vpop.permute.xlu0 %1066
        %1070 = vset.pattern.permute.xlu0 0
        %1071 = vperm.xlu0 %1070, %v1045
        %v1072 = vpop.permute.xlu0 %1071
        %1075 = vset.pattern.permute.xlu0 0
        %1076 = vperm.xlu0 %1075, %v1046
        %v1077 = vpop.permute.xlu0 %1076
        %1080 = vset.pattern.permute.xlu0 0
        %1081 = vperm.xlu0 %1080, %v1047
        %v1082 = vpop.permute.xlu0 %1081
        %1085 = vset.pattern.permute.xlu0 0
        %1086 = vperm.xlu0 %1085, %v1048
        %v1087 = vpop.permute.xlu0 %1086
        %v1089 = vmul.f32 %v1052, %v301
        %v1090 = vmul.f32 %v1057, %v302
        %v1091 = vmul.f32 %v1062, %v303
        %v1092 = vmul.f32 %v1067, %v304
        %v1093 = vmul.f32 %v1072, %v305
        %v1094 = vmul.f32 %v1077, %v306
        %v1095 = vmul.f32 %v1082, %v307
        %v1096 = vmul.f32 %v1087, %v308
        %v1097 = vsel %vm320, %v1089, 0.0
        %v1098 = vrot.slane %v1097, 4
        %v1099 = vadd.f32 %v1097, %v1098
        %v1100 = vrot.slane %v1099, 2
        %v1101 = vadd.f32 %v1099, %v1100
        %v1102 = vrot.slane %v1101, 1
        %v1103 = vadd.f32 %v1101, %v1102
        %v1104 = vsel %vm320, %v1090, 0.0
        %v1105 = vrot.slane %v1104, 4
        %v1106 = vadd.f32 %v1104, %v1105
        %v1107 = vrot.slane %v1106, 2
        %v1108 = vadd.f32 %v1106, %v1107
        %v1109 = vrot.slane %v1108, 1
        %v1110 = vadd.f32 %v1108, %v1109
        %v1111 = vsel %vm320, %v1091, 0.0
        %v1112 = vrot.slane %v1111, 4
        %v1113 = vadd.f32 %v1111, %v1112
        %v1114 = vrot.slane %v1113, 2
        %v1115 = vadd.f32 %v1113, %v1114
        %v1116 = vrot.slane %v1115, 1
        %v1117 = vadd.f32 %v1115, %v1116
        %v1118 = vsel %vm320, %v1092, 0.0
        %v1119 = vrot.slane %v1118, 4
        %v1120 = vadd.f32 %v1118, %v1119
        %v1121 = vrot.slane %v1120, 2
        %v1122 = vadd.f32 %v1120, %v1121
        %v1123 = vrot.slane %v1122, 1
        %v1124 = vadd.f32 %v1122, %v1123
        %v1125 = vsel %vm320, %v1093, 0.0
        %v1126 = vrot.slane %v1125, 4
        %v1127 = vadd.f32 %v1125, %v1126
        %v1128 = vrot.slane %v1127, 2
        %v1129 = vadd.f32 %v1127, %v1128
        %v1130 = vrot.slane %v1129, 1
        %v1131 = vadd.f32 %v1129, %v1130
        %v1132 = vsel %vm320, %v1094, 0.0
        %v1133 = vrot.slane %v1132, 4
        %v1134 = vadd.f32 %v1132, %v1133
        %v1135 = vrot.slane %v1134, 2
        %v1136 = vadd.f32 %v1134, %v1135
        %v1137 = vrot.slane %v1136, 1
        %v1138 = vadd.f32 %v1136, %v1137
        %v1139 = vsel %vm320, %v1095, 0.0
        %v1140 = vrot.slane %v1139, 4
        %v1141 = vadd.f32 %v1139, %v1140
        %v1142 = vrot.slane %v1141, 2
        %v1143 = vadd.f32 %v1141, %v1142
        %v1144 = vrot.slane %v1143, 1
        %v1145 = vadd.f32 %v1143, %v1144
        %v1146 = vsel %vm320, %v1096, 0.0
        %v1147 = vrot.slane %v1146, 4
        %v1148 = vadd.f32 %v1146, %v1147
        %v1149 = vrot.slane %v1148, 2
        %v1150 = vadd.f32 %v1148, %v1149
        %v1151 = vrot.slane %v1150, 1
        %v1152 = vadd.f32 %v1150, %v1151
        %v1153 = vld [vmem:[#allocation6 + $0x18] sm:$0xff]
        %v1154 = vld [vmem:[#allocation6 + $0x40] sm:$0xff]
        %v1155 = vld [vmem:[#allocation6 + $0x68] sm:$0xff]
        %v1156 = vld [vmem:[#allocation6 + $0x90] sm:$0xff]
        %v1165 = vsel %vm840, %v1110, %v1103
        %v1166 = vsel %vm842, %v1117, %v1165
        %v1167 = vsel %vm844, %v1124, %v1166
        %v1168 = vsel %vm846, %v1131, %v1167
        %v1169 = vsel %vm848, %v1138, %v1168
        %v1170 = vsel %vm850, %v1145, %v1169
        %v1171 = vsel %vm852, %v1152, %v1170
        %v1172 = vsel %vm320, %v1171, 0
        %1174 = vmatprep.subr.mxu0 0.0
        %1175 = vmatpush1.msra.mxu0 0.0
        %1176 = vmatprep.subr.mxu0 0.0
        %1177 = vmatpush1.msra.mxu0 0.0
        %1178 = vmatprep.subr.mxu0 0.0
        %1179 = vmatpush1.msra.mxu0 0.0
        %1180 = vmatprep.subr.mxu0 0.0
        %1181 = vmatpush1.msra.mxu0 0.0
        %1182 = vmatprep.subr.mxu0 0.0
        %1183 = vmatpush1.msra.mxu0 0.0
        %1184 = vmatprep.subr.mxu0 0.0
        %1185 = vmatpush1.msra.mxu0 0.0
        %1186 = vmatprep.subr.mxu0 0.0
        %1187 = vmatpush1.msra.mxu0 0.0
        %1188 = vmatprep.subr.mxu0 0.0
        %1189 = vmatpush1.msra.mxu0 0.0
        %1190 = vmatprep.subr.mxu0 0.0
        %1191 = vmatpush1.msra.mxu0 0.0
        %1192 = vmatprep.subr.mxu0 0.0
        %1193 = vmatpush1.msra.mxu0 0.0
        %1194 = vmatprep.subr.mxu0 0.0
        %1195 = vmatpush1.msra.mxu0 0.0
        %1196 = vmatprep.subr.mxu0 0.0
        %1197 = vmatpush1.msra.mxu0 0.0
        %1198 = vmatprep.subr.mxu0 0.0
        %1199 = vmatpush1.msra.mxu0 %v1156
        %1200 = vmatprep.subr.mxu0 0.0
        %1201 = vmatpush1.msra.mxu0 %v1155
        %1202 = vmatprep.subr.mxu0 0.0
        %1203 = vmatpush1.msra.mxu0 %v1154
        %1204 = vmatprep.subr.mxu0 0.0
        %1205 = vmatpush1.msra.mxu0 %v1153
        %1206 = vmatprep.subr.mxu0 0.0
        %1207 = vmatpush2.msra.mxu0 0.0
        %1208 = vmatprep.subr.mxu0 0.0
        %1209 = vmatpush2.msra.mxu0 0.0
        %1210 = vmatprep.subr.mxu0 0.0
        %1211 = vmatpush2.msra.mxu0 0.0
        %1212 = vmatprep.subr.mxu0 0.0
        %1213 = vmatpush2.msra.mxu0 0.0
        %1214 = vmatprep.subr.mxu0 0.0
        %1215 = vmatpush2.msra.mxu0 0.0
        %1216 = vmatprep.subr.mxu0 0.0
        %1217 = vmatpush2.msra.mxu0 0.0
        %1218 = vmatprep.subr.mxu0 0.0
        %1219 = vmatpush2.msra.mxu0 0.0
        %1220 = vmatprep.subr.mxu0 0.0
        %1221 = vmatpush2.msra.mxu0 0.0
        %1222 = vmatprep.subr.mxu0 0.0
        %1223 = vmatpush2.msra.mxu0 0.0
        %1224 = vmatprep.subr.mxu0 0.0
        %1225 = vmatpush2.msra.mxu0 0.0
        %1226 = vmatprep.subr.mxu0 0.0
        %1227 = vmatpush2.msra.mxu0 0.0
        %1228 = vmatprep.subr.mxu0 0.0
        %1229 = vmatpush2.msra.mxu0 0.0
        %1230 = vmatprep.subr.mxu0 0.0
        %1231 = vmatpush2.msra.mxu0 0.0
        %1232 = vmatprep.subr.mxu0 0.0
        %1233 = vmatpush2.msra.mxu0 0.0
        %1234 = vmatprep.subr.mxu0 0.0
        %1235 = vmatpush2.msra.mxu0 0.0
        %1236 = vmatprep.subr.mxu0 0.0
        %1237 = vmatpush2.msra.mxu0 0.0
        %1238 = vmatprep.mubr.f32.mxu0 0.0
        %1239 = vmatmul.mubr.f32.gmra.mxu0 %v1172
        %v1240 = vpop.f32.mrf.mxu0
        %v1241 = vadd.f32 0.0, %v1240
        %v1242 = vpop.f32.mrf.mxu0
        %1243 = vdwg.mxu0
        %v1244 = vld [vmem:[%s5 + $0x2] sm:$0x1]
        %1246 = vrot.lane.b32.xlu0 %v1241, 32
        %v1247 = vpop.permute.xlu0 %1246
        %v1249 = vadd.f32 %v583, %v1247
        %v1251 = vlaneseq
        %v1252 = vshrl.u32 %v1251, 7
        %v1253 = vsub.s32 0, %v1252
        %v1254 = vrot.slane %v1244, %v1253
        %v1256 = vadd.f32 %v1249, %v1254
        %v1257 = vtanh.pop %v1256
        %v1258 = vld [vmem:[#allocation6 + $0x20] sm:$0xff]
        %v1259 = vld [vmem:[#allocation6 + $0x48] sm:$0xff]
        %v1260 = vld [vmem:[#allocation6 + $0x70] sm:$0xff]
        %v1261 = vld [vmem:[#allocation6 + $0x98] sm:$0xff]
        %v1262 = vld [vmem:[%s5 + $0x4] sm:$0x1]
        %v1264 = vlaneseq
        %v1265 = vshrl.u32 %v1264, 7
        %v1266 = vsub.s32 0, %v1265
        %v1267 = vrot.slane %v1262, %v1266
        %1270 = vrot.lane.b32.xlu0 %v1257, 96
        %v1271 = vpop.permute.xlu0 %1270
        %v1272 = vsel %vm320, %v1271, 0
        %1274 = vmatprep.subr.mxu0 0.0
        %1275 = vmatpush1.msra.mxu0 0.0
        %1276 = vmatprep.subr.mxu0 0.0
        %1277 = vmatpush1.msra.mxu0 0.0
        %1278 = vmatprep.subr.mxu0 0.0
        %1279 = vmatpush1.msra.mxu0 0.0
        %1280 = vmatprep.subr.mxu0 0.0
        %1281 = vmatpush1.msra.mxu0 0.0
        %1282 = vmatprep.subr.mxu0 0.0
        %1283 = vmatpush1.msra.mxu0 0.0
        %1284 = vmatprep.subr.mxu0 0.0
        %1285 = vmatpush1.msra.mxu0 0.0
        %1286 = vmatprep.subr.mxu0 0.0
        %1287 = vmatpush1.msra.mxu0 0.0
        %1288 = vmatprep.subr.mxu0 0.0
        %1289 = vmatpush1.msra.mxu0 0.0
        %1290 = vmatprep.subr.mxu0 0.0
        %1291 = vmatpush1.msra.mxu0 0.0
        %1292 = vmatprep.subr.mxu0 0.0
        %1293 = vmatpush1.msra.mxu0 0.0
        %1294 = vmatprep.subr.mxu0 0.0
        %1295 = vmatpush1.msra.mxu0 0.0
        %1296 = vmatprep.subr.mxu0 0.0
        %1297 = vmatpush1.msra.mxu0 0.0
        %1298 = vmatprep.subr.mxu0 0.0
        %1299 = vmatpush1.msra.mxu0 %v1261
        %1300 = vmatprep.subr.mxu0 0.0
        %1301 = vmatpush1.msra.mxu0 %v1260
        %1302 = vmatprep.subr.mxu0 0.0
        %1303 = vmatpush1.msra.mxu0 %v1259
        %1304 = vmatprep.subr.mxu0 0.0
        %1305 = vmatpush1.msra.mxu0 %v1258
        %1306 = vmatprep.subr.mxu0 0.0
        %1307 = vmatpush2.msra.mxu0 0.0
        %1308 = vmatprep.subr.mxu0 0.0
        %1309 = vmatpush2.msra.mxu0 0.0
        %1310 = vmatprep.subr.mxu0 0.0
        %1311 = vmatpush2.msra.mxu0 0.0
        %1312 = vmatprep.subr.mxu0 0.0
        %1313 = vmatpush2.msra.mxu0 0.0
        %1314 = vmatprep.subr.mxu0 0.0
        %1315 = vmatpush2.msra.mxu0 0.0
        %1316 = vmatprep.subr.mxu0 0.0
        %1317 = vmatpush2.msra.mxu0 0.0
        %1318 = vmatprep.subr.mxu0 0.0
        %1319 = vmatpush2.msra.mxu0 0.0
        %1320 = vmatprep.subr.mxu0 0.0
        %1321 = vmatpush2.msra.mxu0 0.0
        %1322 = vmatprep.subr.mxu0 0.0
        %1323 = vmatpush2.msra.mxu0 0.0
        %1324 = vmatprep.subr.mxu0 0.0
        %1325 = vmatpush2.msra.mxu0 0.0
        %1326 = vmatprep.subr.mxu0 0.0
        %1327 = vmatpush2.msra.mxu0 0.0
        %1328 = vmatprep.subr.mxu0 0.0
        %1329 = vmatpush2.msra.mxu0 0.0
        %1330 = vmatprep.subr.mxu0 0.0
        %1331 = vmatpush2.msra.mxu0 0.0
        %1332 = vmatprep.subr.mxu0 0.0
        %1333 = vmatpush2.msra.mxu0 0.0
        %1334 = vmatprep.subr.mxu0 0.0
        %1335 = vmatpush2.msra.mxu0 0.0
        %1336 = vmatprep.subr.mxu0 0.0
        %1337 = vmatpush2.msra.mxu0 0.0
        %1338 = vmatprep.mubr.f32.mxu0 0.0
        %1339 = vmatmul.mubr.f32.gmra.mxu0 %v1272
        %v1340 = vpop.f32.mrf.mxu0
        %v1341 = vadd.f32 %v1267, %v1340
        %v1342 = vpop.f32.mrf.mxu0
        %1343 = vdwg.mxu0
        %1344 = vmax.xlane.f32.xlu0 %v1341
        %v1345 = vpop.xlane.xlu0 %1344
        %v1346 = vsub.f32 %v1341, %v1345
        %v1347 = vmul.f32 %v1346, 1.442695
        %v1348 = vpow.pop %v1347
        %1349 = vadd.xlane.f32.xlu0 %v1348
        %v1350 = vpop.xlane.xlu0 %1349
        %v1351 = vrcp.pop %v1350
        %v1352 = vmul.f32 %v1348, %v1351
        %1353 = vst [vmem:[%s248] sm:$0xff] %v1352
        %1355 = vst.msk [vmem:[#allocation3] sm:$0xff] %vm320, %v513
        %p1356 = scmp.eq.s32.totalorder %s30, 7
        // Predicated region
        $region49: #{decode.1} parent=39 // pred_check
          %p1357 = pneg %p1356
        $region50: #{decode.1} parent=39 // pred_check_branch
          %1359 = sbr.rel (%p1357) target = $region52
        $region51: #{decode.1} parent=39 // pred_region
          %1360 = vst.msk [vmem:[#allocation10] sm:$0xff] %vm320, %v513
        $region52: #{decode.1} parent=39 // pred_fallthru
          _
        %s1361 = sand.u32 %s143, 1
        %s1362 = scalar_lea.sflag [#allocation8], %s1361
        %s1363 = sand.u32 %s143, 1
        %s1364 = smul.addr %s1363, 8
        %s1365 = scalar_lea.vmem [#allocation9], %s1364
        // Predicated region
        $region53: #{decode.1} parent=39 // pred_check
          %p1366 = pneg %p153
        $region54: #{decode.1} parent=39 // pred_check_branch
          %1368 = sbr.rel (%p1366) target = $region56
        $region55: #{decode.1} parent=39 // pred_region
          %s1370 = ssub.s32 128, 128
          %1371 = vsyncadd %s1362, %s1370
          %s1372 = smul.addr %s30, 128
          %s1373 = scalar_lea.hbm %s6, %s1372
          %s1375 = sshll.u32 %s1365, 4
          %s1376 = int_to_ptr.vmem [resolvable:$true] %s1375
          %1378 = dma.vmem_to_hbm [thread:$0]  %s1376, 128, %s1373, %s1362
        $region56: #{decode.1} parent=39 // pred_fallthru
          _
        // Predicated region
        $region57: #{decode.1} parent=39 // pred_check
          %p1379 = pneg %p174
        $region58: #{decode.1} parent=39 // pred_check_branch
          %1381 = sbr.rel (%p1379) target = $region60
        $region59: #{decode.1} parent=39 // pred_region
          %s1383 = ssub.s32 128, 128
          %1384 = vsyncadd [#allocation11], %s1383
          %s1386 = sshll.u32 [#allocation10], 4
          %s1387 = int_to_ptr.vmem [resolvable:$true] %s1386
          %1389 = dma.vmem_to_hbm [thread:$0]  %s1387, 128, %s7, [#allocation11]
        $region60: #{decode.1} parent=39 // pred_fallthru
          _
        // Predicated region
        $region61: #{decode.1} parent=39 // pred_check
          %p1390 = pneg %p174
        $region62: #{decode.1} parent=39 // pred_check_branch
          %1392 = sbr.rel (%p1390) target = $region64
        $region63: #{decode.1} parent=39 // pred_region
          %1393 = dma.done [#allocation11], 128
        $region64: #{decode.1} parent=39 // pred_fallthru
          _
      $region40: #{decode.1} parent=5 // pred_fallthru
        _
      %p1394 = scmp.le.s32.totalorder 2, %s25
      // Predicated region
      $region65: #{decode.1} parent=5 // pred_check
        %p1395 = pneg %p1394
      $region66: #{decode.1} parent=5 // pred_check_branch
        %1397 = sbr.rel (%p1395) target = $region68
      $region67: #{decode.1} parent=5 // pred_region
        %s1398 = ssub.s32 %s25, 2
        // Predicated region
        $region69: #{decode.1} parent=67 // pred_check
          %p1399 = pneg %p159
        $region70: #{decode.1} parent=67 // pred_check_branch
          %1401 = sbr.rel (%p1399) target = $region72
        $region71: #{decode.1} parent=67 // pred_region
          %s1402 = sand.u32 %s144, 1
          %s1403 = scalar_lea.sflag [#allocation8], %s1402
          %s1404 = sand.u32 %s144, 1
          %s1405 = smul.addr %s1404, 8
          %s1406 = scalar_lea.vmem [#allocation9], %s1405
          %1407 = dma.done %s1403, 128
        $region72: #{decode.1} parent=67 // pred_fallthru
          _
      $region68: #{decode.1} parent=5 // pred_fallthru
        _
    $region6: #{decode.1} parent=1 // loop_footer
      %s29 = sadd.s32 1, %s25
    $region7: #{decode.1} parent=1 // loop_footer_branch
      %24 = sbr.rel target = $region3
    $region8: #{decode.1} parent=1 // loop_exit
      _
    %1408 = vsyncpa [#allocation7], 1
    %s1409 = scalar_lea.sflag [#allocation7], 1
    %1410 = vsyncpa %s1409, 1
    %1411 = vsyncpa [#allocation8], 1
    %s1412 = scalar_lea.sflag [#allocation8], 1
    %1413 = vsyncpa %s1412, 1
    %1414 = vsyncpa [#allocation11], 1

</llo_original>
